<compile_context>
chip_gen: v5e
topology: v5e:2x2
jax: 0.10.0
libtpu: 0.0.40
codegen_flags: <defaults>
</compile_context>

<pallas_src>
import functools

import jax
import jax.numpy as jnp
from jax.experimental import pallas as pl
from jax.experimental.pallas import tpu as pltpu

EPS = 1e-12


# ----------------------------------------------------------------------------
# fused per-layer kernel (grid axis = layer index, sequential carry in VMEM)
# ----------------------------------------------------------------------------
def _fused_layer_kernel(
    node_feats_ref, init_adj_ref, emb_ref,
    gamma_ref, beta_ref, mean_ref, var_ref,
    wl_ref,
    w_gcn_ref, b_gcn_ref,
    wg_ref, bg_ref,
    wm_ref, bm_ref,
    out_ref,
    feat_scr,
    *, epsilon, skip, bd):
  l = pl.program_id(0)
  n_layers = pl.num_programs(0)

  # layer 0 consumes the raw node features; later layers the carried features.
  @pl.when(l == 0)
  def _():
    feat_scr[...] = node_feats_ref[...]

  pre_feat = feat_scr[...]

  # --- norms[l](pre_feat): BatchNorm1d in eval mode -------------------------
  # fold gamma into the rsqrt scale so the BN body is one mul + one add
  scale = jax.lax.rsqrt(var_ref[...] + 1e-5) * gamma_ref[...]
  feat_bn = (pre_feat - mean_ref[...]) * scale + beta_ref[...]

  # --- learn_adj: weighted-cosine GraphLearner + skip-conn mixing -----------
  # (feat_adj_dropout is a no-op: training=False)
  xw = feat_bn * wl_ref[...]
  xn = xw * jax.lax.rsqrt(
      jnp.maximum(jnp.sum(xw * xw, axis=-1, keepdims=True), EPS))
  # similarity = xn @ xn^T without materializing a transpose (trans-B contraction)
  s = jax.lax.dot_general(xn, xn, (((1,), (1,)), ((), ())),
                          preferred_element_type=jnp.float32)
  s = jnp.maximum(s, 0.0)
  raw = jnp.where(s > epsilon, s, 0.0)
  rowsum = jnp.sum(raw, axis=-1, keepdims=True)
  inv_rowsum = pl.reciprocal(jnp.maximum(rowsum, EPS), approx=True)
  adj = skip * init_adj_ref[...] + (1.0 - skip) * (raw * inv_rowsum)

  # --- GCN branch: relu -> X@W + b -> A @ (XW) -------------------------------
  h = jnp.maximum(feat_bn, 0.0)
  h = jnp.dot(h, w_gcn_ref[...], preferred_element_type=jnp.float32) + b_gcn_ref[...]
  gcn_out = jnp.dot(adj, h, preferred_element_type=jnp.float32)

  # --- degree embedding: d = adj.sum(0).long(); emb[d] via one-hot matmul ----
  emb_rows = emb_ref.shape[0]
  n_nodes = adj.shape[0]
  deg_row = jnp.sum(adj, axis=0, keepdims=True)                    # (1, N)
  deg_idx = jnp.clip(deg_row.astype(jnp.int32), 0, emb_rows - 1)   # (1, N)
  # onehot_T[r, i] = 1 iff deg[i] == r  -> d_emb = onehot_T^T @ emb (MXU)
  onehot_t = (jax.lax.broadcasted_iota(jnp.int32, (emb_rows, n_nodes), 0)
              == deg_idx).astype(jnp.float32)
  d_emb = jax.lax.dot_general(onehot_t, emb_ref[...],
                              (((0,), (0,)), ((), ())),
                              preferred_element_type=jnp.float32)  # (N, H)

  # --- grouping -> L2 normalize -> MLP -> balanced mix -> residual -----------
  g = jnp.dot(pre_feat, wg_ref[...], preferred_element_type=jnp.float32) + bg_ref[...]
  gn = g * jax.lax.rsqrt(
      jnp.maximum(jnp.sum(g * g, axis=-1, keepdims=True), EPS * EPS))
  m = jnp.dot(gn, wm_ref[...], preferred_element_type=jnp.float32) + bm_ref[...]
  cur_feat = gcn_out + bd * m + (1.0 - bd) * d_emb

  # carry to next layer (VMEM-resident, no HBM round trip)
  feat_scr[...] = cur_feat

  # --- final layer: log_softmax over classes/features ------------------------
  @pl.when(l == n_layers - 1)
  def _():
    mx = jnp.max(cur_feat, axis=-1, keepdims=True)
    e = jnp.exp(cur_feat - mx)
    out_ref[...] = cur_feat - mx - jnp.log(jnp.sum(e, axis=-1, keepdims=True))


# ----------------------------------------------------------------------------
# forward wrapper (eval path == test_epoch2): one pallas_call for all layers
# ----------------------------------------------------------------------------
_PER_LAYER_KEYS = ("gamma", "beta", "mean", "var", "wl",
                   "w_gcn", "b_gcn", "wg", "bg", "wm", "bm")


def _resident_spec(x):
  nd = x.ndim
  return pl.BlockSpec(tuple(x.shape), lambda l, _nd=nd: (0,) * _nd)


def _layer_spec(x):
  tail = tuple(x.shape[1:])
  nt = len(tail)
  return pl.BlockSpec((None,) + tail, lambda l, _nt=nt: (l,) + (0,) * _nt)


def deeper_gcn_forward(node_feats, init_adj, num_extra_layers, params):
  n, d = node_feats.shape
  num_layers = num_extra_layers + 1
  stk = params["stacked"]
  emb = params["emb_table"]
  hid = stk["wm"].shape[-1]
  assert hid == d, "residual add requires hid_dim == node_feat_dim"

  kernel = functools.partial(
      _fused_layer_kernel,
      epsilon=params["epsilon"],
      skip=params["graph_skip_conn"],
      bd=params["balanced_degree"])

  in_arrays = [node_feats, init_adj, emb] + [stk[k] for k in _PER_LAYER_KEYS]
  in_specs = ([_resident_spec(node_feats), _resident_spec(init_adj),
               _resident_spec(emb)]
              + [_layer_spec(stk[k]) for k in _PER_LAYER_KEYS])

  return pl.pallas_call(
      kernel,
      grid=(num_layers,),
      in_specs=in_specs,
      out_specs=pl.BlockSpec((n, hid), lambda l: (0, 0)),
      out_shape=jax.ShapeDtypeStruct((n, hid), jnp.float32),
      scratch_shapes=[pltpu.VMEM((n, d), jnp.float32)],
      compiler_params=pltpu.CompilerParams(
          dimension_semantics=("arbitrary",)),
  )(*in_arrays)


# ----------------------------------------------------------------------------
# deterministic parameter construction (stacked over layers)
# ----------------------------------------------------------------------------
def make_params(key, num_layers, feat_dim, hid_dim, emb_dim, emb_rows):
  L = num_layers
  ks = jax.random.split(key, 7)
  stacked = dict(
      gamma=jnp.ones((L, 1, feat_dim), jnp.float32),
      beta=jnp.zeros((L, 1, feat_dim), jnp.float32),
      mean=jnp.zeros((L, 1, feat_dim), jnp.float32),
      var=jnp.ones((L, 1, feat_dim), jnp.float32),
      wl=jax.random.uniform(ks[0], (L, 1, feat_dim), jnp.float32, 0.5, 1.5),
      w_gcn=0.1 * jax.random.normal(ks[1], (L, feat_dim, feat_dim), jnp.float32),
      b_gcn=jnp.zeros((L, 1, feat_dim), jnp.float32),
      wg=0.1 * jax.random.normal(ks[2], (L, feat_dim, emb_dim), jnp.float32),
      bg=0.01 * jax.random.normal(ks[3], (L, 1, emb_dim), jnp.float32),
      wm=0.1 * jax.random.normal(ks[4], (L, emb_dim, hid_dim), jnp.float32),
      bm=0.01 * jax.random.normal(ks[5], (L, 1, hid_dim), jnp.float32),
  )
  emb_table = 0.1 * jax.random.normal(ks[6], (emb_rows, hid_dim), jnp.float32)
  return dict(stacked=stacked, emb_table=emb_table,
              epsilon=0.3, graph_skip_conn=0.7, balanced_degree=0.5)


if __name__ == "__main__":
  N, D = 128, 128          # nodes, node_feat_dim == hid_dim (lane-dense)
  EXTRA_LAYERS = 1         # `layer` argument of test_epoch2
  EMB_ROWS = 256           # degree-embedding table rows

  key = jax.random.PRNGKey(0)
  k_feat, k_adj, k_par = jax.random.split(key, 3)

  node_feats = jax.random.normal(k_feat, (N, D), jnp.float32)

  a = jax.random.uniform(k_adj, (N, N), jnp.float32)
  a = jnp.where(a > 0.8, a, 0.0)
  a = 0.5 * (a + a.T) + jnp.eye(N, dtype=jnp.float32)
  init_adj = a / jnp.maximum(jnp.sum(a, axis=-1, keepdims=True), EPS)

  params = make_params(k_par, EXTRA_LAYERS + 1, D, D,
                       emb_dim=D, emb_rows=EMB_ROWS)

  out = deeper_gcn_forward(node_feats, init_adj, EXTRA_LAYERS, params)
  out = jax.block_until_ready(out)
  assert out.shape == (N, D)
  assert bool(jnp.all(jnp.isfinite(out)))
  print("KERNEL_OK")
</pallas_src>

<mosaic_0001>
module attributes {stable_mosaic.version = 11 : i64} {
  func.func @_fused_layer_kernel(%arg0: i32, %arg1: memref<128x128xf32, #tpu.memory_space<vmem>>, %arg2: memref<128x128xf32, #tpu.memory_space<vmem>>, %arg3: memref<256x128xf32, #tpu.memory_space<vmem>>, %arg4: memref<1x1x128xf32, #tpu.memory_space<vmem>>, %arg5: memref<1x1x128xf32, #tpu.memory_space<vmem>>, %arg6: memref<1x1x128xf32, #tpu.memory_space<vmem>>, %arg7: memref<1x1x128xf32, #tpu.memory_space<vmem>>, %arg8: memref<1x1x128xf32, #tpu.memory_space<vmem>>, %arg9: memref<1x128x128xf32, #tpu.memory_space<vmem>>, %arg10: memref<1x1x128xf32, #tpu.memory_space<vmem>>, %arg11: memref<1x128x128xf32, #tpu.memory_space<vmem>>, %arg12: memref<1x1x128xf32, #tpu.memory_space<vmem>>, %arg13: memref<1x128x128xf32, #tpu.memory_space<vmem>>, %arg14: memref<1x1x128xf32, #tpu.memory_space<vmem>>, %arg15: memref<128x128xf32, #tpu.memory_space<vmem>>, %arg16: memref<128x128xf32, #tpu.memory_space<vmem>>) attributes {dimension_semantics = [#tpu.dimension_semantics<arbitrary>], iteration_bounds = array<i64: 2>, scalar_prefetch = 0 : i64, scratch_operands = 1 : i64, tpu.core_type = #tpu.core_type<tc>, window_params = [{pipeline_mode = #tpu.pipeline_mode<synchronous>, transform_indices = @transform_0, window_bounds = array<i64: 128, 128>}, {pipeline_mode = #tpu.pipeline_mode<synchronous>, transform_indices = @transform_1, window_bounds = array<i64: 128, 128>}, {pipeline_mode = #tpu.pipeline_mode<synchronous>, transform_indices = @transform_2, window_bounds = array<i64: 256, 128>}, {transform_indices = @transform_3, window_bounds = array<i64: 1, 1, 128>}, {transform_indices = @transform_4, window_bounds = array<i64: 1, 1, 128>}, {transform_indices = @transform_5, window_bounds = array<i64: 1, 1, 128>}, {transform_indices = @transform_6, window_bounds = array<i64: 1, 1, 128>}, {transform_indices = @transform_7, window_bounds = array<i64: 1, 1, 128>}, {transform_indices = @transform_8, window_bounds = array<i64: 1, 128, 128>}, {transform_indices = @transform_9, window_bounds = array<i64: 1, 1, 128>}, {transform_indices = @transform_10, window_bounds = array<i64: 1, 128, 128>}, {transform_indices = @transform_11, window_bounds = array<i64: 1, 1, 128>}, {transform_indices = @transform_12, window_bounds = array<i64: 1, 128, 128>}, {transform_indices = @transform_13, window_bounds = array<i64: 1, 1, 128>}, {pipeline_mode = #tpu.pipeline_mode<synchronous>, transform_indices = @transform_14, window_bounds = array<i64: 128, 128>}]} {
    %c0_i32 = arith.constant 0 : i32
    %0 = arith.cmpi eq, %arg0, %c0_i32 : i32
    %1 = arith.extui %0 : i1 to i32
    %c0_i32_0 = arith.constant 0 : i32
    %2 = arith.cmpi ne, %1, %c0_i32_0 : i32
    scf.if %2 {
      %c0_64 = arith.constant 0 : index
      %c0_65 = arith.constant 0 : index
      %110 = vector.load %arg1[%c0_64, %c0_65] : memref<128x128xf32, #tpu.memory_space<vmem>>, vector<128x128xf32>
      %c0_66 = arith.constant 0 : index
      %c0_67 = arith.constant 0 : index
      %111 = vector.load %arg16[%c0_66, %c0_67] : memref<128x128xf32, #tpu.memory_space<vmem>>, vector<128x128xf32>
      tpu.vector_store %arg16[%c0_66, %c0_67], %110 {strides = array<i32>} : memref<128x128xf32, #tpu.memory_space<vmem>>, vector<128x128xf32>,
    } else {
    }
    %c0 = arith.constant 0 : index
    %c0_1 = arith.constant 0 : index
    %3 = vector.load %arg16[%c0, %c0_1] : memref<128x128xf32, #tpu.memory_space<vmem>>, vector<128x128xf32>
    %c0_2 = arith.constant 0 : index
    %c0_3 = arith.constant 0 : index
    %c0_4 = arith.constant 0 : index
    %4 = vector.load %arg7[%c0_2, %c0_3, %c0_4] : memref<1x1x128xf32, #tpu.memory_space<vmem>>, vector<1x1x128xf32>
    %5 = vector.shape_cast %4 : vector<1x1x128xf32> to vector<1x128xf32>
    %cst = arith.constant 9.99999974E-6 : f32
    %6 = vector.broadcast %cst : f32 to vector<1x128xf32>
    %7 = arith.addf %5, %6 : vector<1x128xf32>
    %8 = math.rsqrt %7 : vector<1x128xf32>
    %c0_5 = arith.constant 0 : index
    %c0_6 = arith.constant 0 : index
    %c0_7 = arith.constant 0 : index
    %9 = vector.load %arg4[%c0_5, %c0_6, %c0_7] : memref<1x1x128xf32, #tpu.memory_space<vmem>>, vector<1x1x128xf32>
    %10 = vector.shape_cast %9 : vector<1x1x128xf32> to vector<1x128xf32>
    %11 = arith.mulf %8, %10 : vector<1x128xf32>
    %c0_8 = arith.constant 0 : index
    %c0_9 = arith.constant 0 : index
    %c0_10 = arith.constant 0 : index
    %12 = vector.load %arg6[%c0_8, %c0_9, %c0_10] : memref<1x1x128xf32, #tpu.memory_space<vmem>>, vector<1x1x128xf32>
    %13 = vector.shape_cast %12 : vector<1x1x128xf32> to vector<1x128xf32>
    %14 = vector.broadcast %13 : vector<1x128xf32> to vector<128x128xf32>
    %15 = arith.subf %3, %14 : vector<128x128xf32>
    %16 = vector.broadcast %11 : vector<1x128xf32> to vector<128x128xf32>
    %17 = arith.mulf %15, %16 : vector<128x128xf32>
    %c0_11 = arith.constant 0 : index
    %c0_12 = arith.constant 0 : index
    %c0_13 = arith.constant 0 : index
    %18 = vector.load %arg5[%c0_11, %c0_12, %c0_13] : memref<1x1x128xf32, #tpu.memory_space<vmem>>, vector<1x1x128xf32>
    %19 = vector.shape_cast %18 : vector<1x1x128xf32> to vector<1x128xf32>
    %20 = vector.broadcast %19 : vector<1x128xf32> to vector<128x128xf32>
    %21 = arith.addf %17, %20 : vector<128x128xf32>
    %c0_14 = arith.constant 0 : index
    %c0_15 = arith.constant 0 : index
    %c0_16 = arith.constant 0 : index
    %22 = vector.load %arg8[%c0_14, %c0_15, %c0_16] : memref<1x1x128xf32, #tpu.memory_space<vmem>>, vector<1x1x128xf32>
    %23 = vector.shape_cast %22 : vector<1x1x128xf32> to vector<1x128xf32>
    %24 = vector.broadcast %23 : vector<1x128xf32> to vector<128x128xf32>
    %25 = arith.mulf %21, %24 : vector<128x128xf32>
    %26 = arith.mulf %25, %25 : vector<128x128xf32>
    %cst_17 = arith.constant dense<0.000000e+00> : vector<128xf32>
    %27 = vector.multi_reduction <add>, %26, %cst_17 [1] : vector<128x128xf32> to vector<128xf32>
    %28 = vector.shape_cast %27 : vector<128xf32> to vector<128x1xf32>
    %cst_18 = arith.constant 9.99999996E-13 : f32
    %29 = vector.broadcast %cst_18 : f32 to vector<128x1xf32>
    %30 = arith.maximumf %28, %29 : vector<128x1xf32>
    %31 = math.rsqrt %30 : vector<128x1xf32>
    %32 = vector.broadcast %31 : vector<128x1xf32> to vector<128x128xf32>
    %33 = arith.mulf %25, %32 : vector<128x128xf32>
    %cst_19 = arith.constant dense<0.000000e+00> : vector<128x128xf32>
    %34 = tpu.matmul %33, %33, %cst_19 {dimension_numbers = #tpu.dot_dimension_numbers<[1], [1], [0], [0], [0, 0, 1, 0], [], []>} : vector<128x128xf32>, vector<128x128xf32>, vector<128x128xf32> -> vector<128x128xf32>
    %cst_20 = arith.constant 0.000000e+00 : f32
    %35 = vector.broadcast %cst_20 : f32 to vector<128x128xf32>
    %36 = arith.maximumf %34, %35 : vector<128x128xf32>
    %cst_21 = arith.constant 3.000000e-01 : f32
    %37 = vector.broadcast %cst_21 : f32 to vector<128x128xf32>
    %38 = arith.cmpf ogt, %36, %37 : vector<128x128xf32>
    %cst_22 = arith.constant 0.000000e+00 : f32
    %39 = vector.broadcast %cst_22 : f32 to vector<128x128xf32>
    %40 = arith.select %38, %36, %39 : vector<128x128xi1>, vector<128x128xf32>
    %cst_23 = arith.constant dense<0.000000e+00> : vector<128xf32>
    %41 = vector.multi_reduction <add>, %40, %cst_23 [1] : vector<128x128xf32> to vector<128xf32>
    %42 = vector.shape_cast %41 : vector<128xf32> to vector<128x1xf32>
    %cst_24 = arith.constant 9.99999996E-13 : f32
    %43 = vector.broadcast %cst_24 : f32 to vector<128x1xf32>
    %44 = arith.maximumf %42, %43 : vector<128x1xf32>
    %45 = tpu.reciprocal %44 {approx = true} : vector<128x1xf32> -> vector<128x1xf32>
    %c0_25 = arith.constant 0 : index
    %c0_26 = arith.constant 0 : index
    %46 = vector.load %arg2[%c0_25, %c0_26] : memref<128x128xf32, #tpu.memory_space<vmem>>, vector<128x128xf32>
    %cst_27 = arith.constant 0.699999988 : f32
    %47 = vector.broadcast %cst_27 : f32 to vector<128x128xf32>
    %48 = arith.mulf %47, %46 : vector<128x128xf32>
    %49 = vector.broadcast %45 : vector<128x1xf32> to vector<128x128xf32>
    %50 = arith.mulf %40, %49 : vector<128x128xf32>
    %cst_28 = arith.constant 3.000000e-01 : f32
    %51 = vector.broadcast %cst_28 : f32 to vector<128x128xf32>
    %52 = arith.mulf %51, %50 : vector<128x128xf32>
    %53 = arith.addf %48, %52 : vector<128x128xf32>
    %cst_29 = arith.constant 0.000000e+00 : f32
    %54 = vector.broadcast %cst_29 : f32 to vector<128x128xf32>
    %55 = arith.maximumf %21, %54 : vector<128x128xf32>
    %c0_30 = arith.constant 0 : index
    %c0_31 = arith.constant 0 : index
    %c0_32 = arith.constant 0 : index
    %56 = vector.load %arg9[%c0_30, %c0_31, %c0_32] : memref<1x128x128xf32, #tpu.memory_space<vmem>>, vector<1x128x128xf32>
    %57 = vector.shape_cast %56 : vector<1x128x128xf32> to vector<128x128xf32>
    %cst_33 = arith.constant dense<0.000000e+00> : vector<128x128xf32>
    %58 = tpu.matmul %55, %57, %cst_33 {dimension_numbers = #tpu.dot_dimension_numbers<[1], [0], [0], [1], [0, 0, 1, 1], [], []>} : vector<128x128xf32>, vector<128x128xf32>, vector<128x128xf32> -> vector<128x128xf32>
    %c0_34 = arith.constant 0 : index
    %c0_35 = arith.constant 0 : index
    %c0_36 = arith.constant 0 : index
    %59 = vector.load %arg10[%c0_34, %c0_35, %c0_36] : memref<1x1x128xf32, #tpu.memory_space<vmem>>, vector<1x1x128xf32>
    %60 = vector.shape_cast %59 : vector<1x1x128xf32> to vector<1x128xf32>
    %61 = vector.broadcast %60 : vector<1x128xf32> to vector<128x128xf32>
    %62 = arith.addf %58, %61 : vector<128x128xf32>
    %cst_37 = arith.constant dense<0.000000e+00> : vector<128x128xf32>
    %63 = tpu.matmul %53, %62, %cst_37 {dimension_numbers = #tpu.dot_dimension_numbers<[1], [0], [0], [1], [0, 0, 1, 1], [], []>} : vector<128x128xf32>, vector<128x128xf32>, vector<128x128xf32> -> vector<128x128xf32>
    %cst_38 = arith.constant dense<0.000000e+00> : vector<128xf32>
    %64 = vector.multi_reduction <add>, %53, %cst_38 [0] : vector<128x128xf32> to vector<128xf32>
    %65 = vector.shape_cast %64 : vector<128xf32> to vector<1x128xf32>
    %66 = arith.fptosi %65 : vector<1x128xf32> to vector<1x128xi32>
    %c0_i32_39 = arith.constant 0 : i32
    %c255_i32 = arith.constant 255 : i32
    %67 = vector.broadcast %c0_i32_39 : i32 to vector<1x128xi32>
    %68 = arith.maxsi %67, %66 : vector<1x128xi32>
    %69 = vector.broadcast %c255_i32 : i32 to vector<1x128xi32>
    %70 = arith.minsi %69, %68 : vector<1x128xi32>
    %71 = tpu.iota {dimensions = array<i32: 0>} : vector<256x128xi32>
    %72 = vector.broadcast %70 : vector<1x128xi32> to vector<256x128xi32>
    %73 = arith.cmpi eq, %71, %72 : vector<256x128xi32>
    %74 = arith.extui %73 : vector<256x128xi1> to vector<256x128xi32>
    %75 = arith.sitofp %74 : vector<256x128xi32> to vector<256x128xf32>
    %c0_40 = arith.constant 0 : index
    %c0_41 = arith.constant 0 : index
    %76 = vector.load %arg3[%c0_40, %c0_41] : memref<256x128xf32, #tpu.memory_space<vmem>>, vector<256x128xf32>
    %cst_42 = arith.constant dense<0.000000e+00> : vector<128x128xf32>
    %77 = tpu.matmul %75, %76, %cst_42 {dimension_numbers = #tpu.dot_dimension_numbers<[0], [0], [1], [1], [0, 1, 1, 1], [], []>} : vector<256x128xf32>, vector<256x128xf32>, vector<128x128xf32> -> vector<128x128xf32>
    %c0_43 = arith.constant 0 : index
    %c0_44 = arith.constant 0 : index
    %c0_45 = arith.constant 0 : index
    %78 = vector.load %arg11[%c0_43, %c0_44, %c0_45] : memref<1x128x128xf32, #tpu.memory_space<vmem>>, vector<1x128x128xf32>
    %79 = vector.shape_cast %78 : vector<1x128x128xf32> to vector<128x128xf32>
    %cst_46 = arith.constant dense<0.000000e+00> : vector<128x128xf32>
    %80 = tpu.matmul %3, %79, %cst_46 {dimension_numbers = #tpu.dot_dimension_numbers<[1], [0], [0], [1], [0, 0, 1, 1], [], []>} : vector<128x128xf32>, vector<128x128xf32>, vector<128x128xf32> -> vector<128x128xf32>
    %c0_47 = arith.constant 0 : index
    %c0_48 = arith.constant 0 : index
    %c0_49 = arith.constant 0 : index
    %81 = vector.load %arg12[%c0_47, %c0_48, %c0_49] : memref<1x1x128xf32, #tpu.memory_space<vmem>>, vector<1x1x128xf32>
    %82 = vector.shape_cast %81 : vector<1x1x128xf32> to vector<1x128xf32>
    %83 = vector.broadcast %82 : vector<1x128xf32> to vector<128x128xf32>
    %84 = arith.addf %80, %83 : vector<128x128xf32>
    %85 = arith.mulf %84, %84 : vector<128x128xf32>
    %cst_50 = arith.constant dense<0.000000e+00> : vector<128xf32>
    %86 = vector.multi_reduction <add>, %85, %cst_50 [1] : vector<128x128xf32> to vector<128xf32>
    %87 = vector.shape_cast %86 : vector<128xf32> to vector<128x1xf32>
    %cst_51 = arith.constant 1.000000e-24 : f32
    %88 = vector.broadcast %cst_51 : f32 to vector<128x1xf32>
    %89 = arith.maximumf %87, %88 : vector<128x1xf32>
    %90 = math.rsqrt %89 : vector<128x1xf32>
    %91 = vector.broadcast %90 : vector<128x1xf32> to vector<128x128xf32>
    %92 = arith.mulf %84, %91 : vector<128x128xf32>
    %c0_52 = arith.constant 0 : index
    %c0_53 = arith.constant 0 : index
    %c0_54 = arith.constant 0 : index
    %93 = vector.load %arg13[%c0_52, %c0_53, %c0_54] : memref<1x128x128xf32, #tpu.memory_space<vmem>>, vector<1x128x128xf32>
    %94 = vector.shape_cast %93 : vector<1x128x128xf32> to vector<128x128xf32>
    %cst_55 = arith.constant dense<0.000000e+00> : vector<128x128xf32>
    %95 = tpu.matmul %92, %94, %cst_55 {dimension_numbers = #tpu.dot_dimension_numbers<[1], [0], [0], [1], [0, 0, 1, 1], [], []>} : vector<128x128xf32>, vector<128x128xf32>, vector<128x128xf32> -> vector<128x128xf32>
    %c0_56 = arith.constant 0 : index
    %c0_57 = arith.constant 0 : index
    %c0_58 = arith.constant 0 : index
    %96 = vector.load %arg14[%c0_56, %c0_57, %c0_58] : memref<1x1x128xf32, #tpu.memory_space<vmem>>, vector<1x1x128xf32>
    %97 = vector.shape_cast %96 : vector<1x1x128xf32> to vector<1x128xf32>
    %98 = vector.broadcast %97 : vector<1x128xf32> to vector<128x128xf32>
    %99 = arith.addf %95, %98 : vector<128x128xf32>
    %cst_59 = arith.constant 5.000000e-01 : f32
    %100 = vector.broadcast %cst_59 : f32 to vector<128x128xf32>
    %101 = arith.mulf %100, %99 : vector<128x128xf32>
    %102 = arith.addf %63, %101 : vector<128x128xf32>
    %cst_60 = arith.constant 5.000000e-01 : f32
    %103 = vector.broadcast %cst_60 : f32 to vector<128x128xf32>
    %104 = arith.mulf %103, %77 : vector<128x128xf32>
    %105 = arith.addf %102, %104 : vector<128x128xf32>
    %c0_61 = arith.constant 0 : index
    %c0_62 = arith.constant 0 : index
    %106 = vector.load %arg16[%c0_61, %c0_62] : memref<128x128xf32, #tpu.memory_space<vmem>>, vector<128x128xf32>
    tpu.vector_store %arg16[%c0_61, %c0_62], %105 {strides = array<i32>} : memref<128x128xf32, #tpu.memory_space<vmem>>, vector<128x128xf32>,
    %c1_i32 = arith.constant 1 : i32
    %107 = arith.cmpi eq, %arg0, %c1_i32 : i32
    %108 = arith.extui %107 : i1 to i32
    %c0_i32_63 = arith.constant 0 : i32
    %109 = arith.cmpi ne, %108, %c0_i32_63 : i32
    scf.if %109 {
      %cst_64 = arith.constant dense<0xFF800000> : vector<128xf32>
      %110 = vector.multi_reduction <maximumf>, %105, %cst_64 [1] : vector<128x128xf32> to vector<128xf32>
      %111 = vector.shape_cast %110 : vector<128xf32> to vector<128x1xf32>
      %112 = vector.broadcast %111 : vector<128x1xf32> to vector<128x128xf32>
      %113 = arith.subf %105, %112 : vector<128x128xf32>
      %114 = math.exp %113 : vector<128x128xf32>
      %115 = vector.broadcast %111 : vector<128x1xf32> to vector<128x128xf32>
      %116 = arith.subf %105, %115 : vector<128x128xf32>
      %cst_65 = arith.constant dense<0.000000e+00> : vector<128xf32>
      %117 = vector.multi_reduction <add>, %114, %cst_65 [1] : vector<128x128xf32> to vector<128xf32>
      %118 = vector.shape_cast %117 : vector<128xf32> to vector<128x1xf32>
      %119 = math.log %118 : vector<128x1xf32>
      %120 = vector.broadcast %119 : vector<128x1xf32> to vector<128x128xf32>
      %121 = arith.subf %116, %120 : vector<128x128xf32>
      %c0_66 = arith.constant 0 : index
      %c0_67 = arith.constant 0 : index
      %122 = vector.load %arg15[%c0_66, %c0_67] : memref<128x128xf32, #tpu.memory_space<vmem>>, vector<128x128xf32>
      tpu.vector_store %arg15[%c0_66, %c0_67], %121 {strides = array<i32>} : memref<128x128xf32, #tpu.memory_space<vmem>>, vector<128x128xf32>,
    } else {
    }
    return
  }
  func.func @transform_0(%arg0: i32) -> (i32, i32) {
    %c0_i32 = arith.constant 0 : i32
    %c0_i32_0 = arith.constant 0 : i32
    %c0_i32_1 = arith.constant 0 : i32
    return %c0_i32, %c0_i32_0 : i32, i32
  }
  func.func @transform_1(%arg0: i32) -> (i32, i32) {
    %c0_i32 = arith.constant 0 : i32
    %c0_i32_0 = arith.constant 0 : i32
    %c0_i32_1 = arith.constant 0 : i32
    return %c0_i32, %c0_i32_0 : i32, i32
  }
  func.func @transform_2(%arg0: i32) -> (i32, i32) {
    %c0_i32 = arith.constant 0 : i32
    %c0_i32_0 = arith.constant 0 : i32
    %c0_i32_1 = arith.constant 0 : i32
    return %c0_i32, %c0_i32_0 : i32, i32
  }
  func.func @transform_3(%arg0: i32) -> (i32, i32, i32) {
    %c0_i32 = arith.constant 0 : i32
    %c0_i32_0 = arith.constant 0 : i32
    %c0_i32_1 = arith.constant 0 : i32
    return %arg0, %c0_i32, %c0_i32_0 : i32, i32, i32
  }
  func.func @transform_4(%arg0: i32) -> (i32, i32, i32) {
    %c0_i32 = arith.constant 0 : i32
    %c0_i32_0 = arith.constant 0 : i32
    %c0_i32_1 = arith.constant 0 : i32
    return %arg0, %c0_i32, %c0_i32_0 : i32, i32, i32
  }
  func.func @transform_5(%arg0: i32) -> (i32, i32, i32) {
    %c0_i32 = arith.constant 0 : i32
    %c0_i32_0 = arith.constant 0 : i32
    %c0_i32_1 = arith.constant 0 : i32
    return %arg0, %c0_i32, %c0_i32_0 : i32, i32, i32
  }
  func.func @transform_6(%arg0: i32) -> (i32, i32, i32) {
    %c0_i32 = arith.constant 0 : i32
    %c0_i32_0 = arith.constant 0 : i32
    %c0_i32_1 = arith.constant 0 : i32
    return %arg0, %c0_i32, %c0_i32_0 : i32, i32, i32
  }
  func.func @transform_7(%arg0: i32) -> (i32, i32, i32) {
    %c0_i32 = arith.constant 0 : i32
    %c0_i32_0 = arith.constant 0 : i32
    %c0_i32_1 = arith.constant 0 : i32
    return %arg0, %c0_i32, %c0_i32_0 : i32, i32, i32
  }
  func.func @transform_8(%arg0: i32) -> (i32, i32, i32) {
    %c0_i32 = arith.constant 0 : i32
    %c0_i32_0 = arith.constant 0 : i32
    %c0_i32_1 = arith.constant 0 : i32
    return %arg0, %c0_i32, %c0_i32_0 : i32, i32, i32
  }
  func.func @transform_9(%arg0: i32) -> (i32, i32, i32) {
    %c0_i32 = arith.constant 0 : i32
    %c0_i32_0 = arith.constant 0 : i32
    %c0_i32_1 = arith.constant 0 : i32
    return %arg0, %c0_i32, %c0_i32_0 : i32, i32, i32
  }
  func.func @transform_10(%arg0: i32) -> (i32, i32, i32) {
    %c0_i32 = arith.constant 0 : i32
    %c0_i32_0 = arith.constant 0 : i32
    %c0_i32_1 = arith.constant 0 : i32
    return %arg0, %c0_i32, %c0_i32_0 : i32, i32, i32
  }
  func.func @transform_11(%arg0: i32) -> (i32, i32, i32) {
    %c0_i32 = arith.constant 0 : i32
    %c0_i32_0 = arith.constant 0 : i32
    %c0_i32_1 = arith.constant 0 : i32
    return %arg0, %c0_i32, %c0_i32_0 : i32, i32, i32
  }
  func.func @transform_12(%arg0: i32) -> (i32, i32, i32) {
    %c0_i32 = arith.constant 0 : i32
    %c0_i32_0 = arith.constant 0 : i32
    %c0_i32_1 = arith.constant 0 : i32
    return %arg0, %c0_i32, %c0_i32_0 : i32, i32, i32
  }
  func.func @transform_13(%arg0: i32) -> (i32, i32, i32) {
    %c0_i32 = arith.constant 0 : i32
    %c0_i32_0 = arith.constant 0 : i32
    %c0_i32_1 = arith.constant 0 : i32
    return %arg0, %c0_i32, %c0_i32_0 : i32, i32, i32
  }
  func.func @transform_14(%arg0: i32) -> (i32, i32) {
    %c0_i32 = arith.constant 0 : i32
    %c0_i32_0 = arith.constant 0 : i32
    %c0_i32_1 = arith.constant 0 : i32
    return %c0_i32, %c0_i32_0 : i32, i32
  }
}

</mosaic_0001>

<llo_original>
// kernel: tpu_custom_call.1
$region0: #{tpu_custom_call.1}
  #allocation0 [shape = 'u32[]', space=smem, size = 0x4, offset = 0x4, fixed_abs, tag = 'smem constant byte address 0x4 - core index']
  #allocation1 [shape = 'u32[72,128]{1,0:T(1,128)}', space=vmem, size = 0x9000, scoped, tag = 'internal scratch']
  #allocation2 [shape = 'f32[128,128]{1,0:T(8,128)}', space=vmem, size = 0x10000, scoped, tag = 'scratch operand']
  %s0 = inlined_call_operand.hbm [shape: f32[128,128], index: 0, kind: input, shape index: {}]
  %s1 = inlined_call_operand.hbm [shape: f32[128,128], index: 1, kind: input, shape index: {}]
  %s2 = inlined_call_operand.hbm [shape: f32[256,128], index: 2, kind: input, shape index: {}]
  %s3 = inlined_call_operand.vmem [shape: f32[2,1,128], index: 3, kind: input, shape index: {}]
  %s4 = inlined_call_operand.hbm [shape: f32[2,1,128], index: 4, kind: input, shape index: {}]
  %s5 = inlined_call_operand.vmem [shape: f32[2,1,128], index: 5, kind: input, shape index: {}]
  %s6 = inlined_call_operand.hbm [shape: f32[2,1,128], index: 6, kind: input, shape index: {}]
  %s7 = inlined_call_operand.vmem [shape: f32[2,1,128], index: 7, kind: input, shape index: {}]
  %s8 = inlined_call_operand.hbm [shape: f32[2,128,128], index: 8, kind: input, shape index: {}]
  %s9 = inlined_call_operand.vmem [shape: f32[2,1,128], index: 9, kind: input, shape index: {}]
  %s10 = inlined_call_operand.hbm [shape: f32[2,128,128], index: 10, kind: input, shape index: {}]
  %s11 = inlined_call_operand.vmem [shape: f32[2,1,128], index: 11, kind: input, shape index: {}]
  %s12 = inlined_call_operand.hbm [shape: f32[2,128,128], index: 12, kind: input, shape index: {}]
  %s13 = inlined_call_operand.vmem [shape: f32[2,1,128], index: 13, kind: input, shape index: {}]
  %s14 = inlined_call_operand.hbm [shape: f32[128,128], index: 14, kind: output, shape index: {}]
  %s15 = sld [smem:[#allocation0]]
  $region129: #{tpu_custom_call.1} parent=0
    _
  %s17 = ssub.s32 1, %s15
  %s18 = scalar_select 0, %s17, %s15
  $region1: #{tpu_custom_call.1} parent=0
    #allocation3 [shape = 'u8[65536]{0}', space=vmem, size = 0x10000, scoped, tag = 'input window, operand 0, single buffered']
    #allocation4 [shape = 's32[2]{0}', space=sflag, size = 0x8, scoped, tag = 'scoped memory for tpu_custom_call.1']
    #allocation5 [shape = 's32[2]{0}', space=sflag, size = 0x8, scoped, tag = 'scoped memory for tpu_custom_call.1']
    #allocation6 [shape = 'u8[65536]{0}', space=vmem, size = 0x10000, scoped, tag = 'input window, operand 1, single buffered']
    #allocation7 [shape = 's32[1]{0}', space=sflag, size = 0x4, scoped, tag = 'scoped memory for tpu_custom_call.1']
    #allocation8 [shape = 'u8[131072]{0}', space=vmem, size = 0x20000, scoped, tag = 'input window, operand 2, single buffered']
    #allocation9 [shape = 'u8[1024]{0}', space=vmem, size = 0x400, scoped, tag = 'input window, operand 4']
    #allocation10 [shape = 's32[2]{0}', space=sflag, size = 0x8, scoped, tag = 'scoped memory for tpu_custom_call.1']
    #allocation11 [shape = 'u8[1024]{0}', space=vmem, size = 0x400, scoped, tag = 'input window, operand 6']
    #allocation12 [shape = 'u8[131072]{0}', space=vmem, size = 0x20000, scoped, tag = 'input window, operand 8']
    #allocation13 [shape = 's32[2]{0}', space=sflag, size = 0x8, scoped, tag = 'scoped memory for tpu_custom_call.1']
    #allocation14 [shape = 'u8[131072]{0}', space=vmem, size = 0x20000, scoped, tag = 'input window, operand 10']
    #allocation15 [shape = 'u8[131072]{0}', space=vmem, size = 0x20000, scoped, tag = 'input window, operand 12']
    #allocation16 [shape = 's32[2]{0}', space=sflag, size = 0x8, scoped, tag = 'scoped memory for tpu_custom_call.1']
    #allocation17 [shape = 'u8[65536]{0}', space=vmem, size = 0x10000, scoped, tag = 'output window, operand 0, single buffered']
    %19 = vsyncpa [#allocation4], 0
    %20 = vsyncpa [#allocation7], 0
    %21 = vsyncpa [#allocation10], 0
    %s22 = scalar_lea.sflag [#allocation10], 1
    %23 = vsyncpa %s22, 0
    %24 = vsyncpa [#allocation13], 0
    %s25 = scalar_lea.sflag [#allocation13], 1
    %26 = vsyncpa %s25, 0
    %27 = vsyncpa [#allocation16], 0
    %s28 = scalar_lea.sflag [#allocation16], 1
    %29 = vsyncpa %s28, 0
    %30 = vsyncpa [#allocation5], 0
    loop: start=0, step=1, limit=4
    $region2: #{tpu_custom_call.1} parent=1 // loop_pre_header
      _
    $region3: #{tpu_custom_call.1} parent=1 // loop_header
      %s32 = sphi 0, %s36
      %p33 = scmp.ge.s32.totalorder %s32, 4
      %s40 = sphi 0, %s40
      %s42 = sphi 0, %s40
      %s43 = sphi 0, %s42
      %s57 = sphi 0, %s43
      %s61 = sphi 0, %s61
      %s63 = sphi 0, %s61
      %s64 = sphi 0, %s63
      %s78 = sphi 0, %s64
      %s82 = sphi 0, %s82
      %s84 = sphi 0, %s82
      %s85 = sphi 0, %s84
      %s99 = sphi 0, %s85
      %s105 = sphi 0, %s107
      %s108 = sphi 0, %s105
      %s109 = sphi 0, %s108
      %s125 = sphi 0, %s109
      %s131 = sphi 0, %s133
      %s134 = sphi 0, %s131
      %s135 = sphi 0, %s134
      %s151 = sphi 0, %s135
      %s157 = sphi 0, %s159
      %s160 = sphi 0, %s157
      %s161 = sphi 0, %s160
      %s177 = sphi 0, %s161
      %s183 = sphi 0, %s185
      %s186 = sphi 0, %s183
      %s187 = sphi 0, %s186
      %s203 = sphi 0, %s187
      %s209 = sphi 0, %s211
      %s212 = sphi 0, %s209
      %s213 = sphi 0, %s212
      %s229 = sphi 0, %s213
      %s235 = sphi 0, %s237
      %s238 = sphi 0, %s235
      %s239 = sphi 0, %s238
      %s255 = sphi 0, %s239
      %s261 = sphi 0, %s263
      %s264 = sphi 0, %s261
      %s265 = sphi 0, %s264
      %s281 = sphi 0, %s265
      %s287 = sphi 0, %s289
      %s290 = sphi 0, %s287
      %s291 = sphi 0, %s290
      %s307 = sphi 0, %s291
      %s313 = sphi 0, %s315
      %s316 = sphi 0, %s313
      %s317 = sphi 0, %s316
      %s333 = sphi 0, %s317
      %s339 = sphi 0, %s341
      %s342 = sphi 0, %s339
      %s343 = sphi 0, %s342
      %s359 = sphi 0, %s343
      %s365 = sphi 0, %s367
      %s368 = sphi 0, %s365
      %s369 = sphi 0, %s368
      %s385 = sphi 0, %s369
      %s389 = sphi 0, %s389
      %s391 = sphi 0, %s389
      %s392 = sphi 0, %s391
      %s406 = sphi 0, %s392
    $region4: #{tpu_custom_call.1} parent=1 // loop_header_branch
      %35 = sbr.rel (%p33) target = $region8
    $region5: #{tpu_custom_call.1} parent=1 // loop_body
      %s37 = ssub.s32 %s32, 1
      %s38 = ssub.s32 %s32, 2
      %s39 = sadd.s32 %s32, 1
      %s41 = sadd.s32 %s40, 1
      %p44 = scmp.eq.s32.totalorder %s32, 1
      %p45 = scmp.ne.s32.totalorder %s40, %s42
      %p46 = scmp.eq.s32.totalorder %s32, 0
      %p47 = por %p45, %p46
      %p48 = scmp.ne.s32.totalorder %s40, %s42
      %p49 = scmp.eq.s32.totalorder %s37, 1
      %p50 = por %p48, %p49
      %p51 = scmp.ne.s32.totalorder %s42, %s43
      %p52 = scmp.eq.s32.totalorder %s37, 0
      %p53 = por %p51, %p52
      %p54 = scmp.ne.s32.totalorder %s42, %s43
      %p55 = scmp.eq.s32.totalorder %s38, 1
      %p56 = por %p54, %p55
      %p58 = scmp.ne.s32.totalorder %s43, %s57
      %p59 = scmp.eq.s32.totalorder %s38, 0
      %p60 = por %p58, %p59
      %s62 = sadd.s32 %s61, 1
      %p65 = scmp.eq.s32.totalorder %s32, 1
      %p66 = scmp.ne.s32.totalorder %s61, %s63
      %p67 = scmp.eq.s32.totalorder %s32, 0
      %p68 = por %p66, %p67
      %p69 = scmp.ne.s32.totalorder %s61, %s63
      %p70 = scmp.eq.s32.totalorder %s37, 1
      %p71 = por %p69, %p70
      %p72 = scmp.ne.s32.totalorder %s63, %s64
      %p73 = scmp.eq.s32.totalorder %s37, 0
      %p74 = por %p72, %p73
      %p75 = scmp.ne.s32.totalorder %s63, %s64
      %p76 = scmp.eq.s32.totalorder %s38, 1
      %p77 = por %p75, %p76
      %p79 = scmp.ne.s32.totalorder %s64, %s78
      %p80 = scmp.eq.s32.totalorder %s38, 0
      %p81 = por %p79, %p80
      %s83 = sadd.s32 %s82, 1
      %p86 = scmp.eq.s32.totalorder %s32, 1
      %p87 = scmp.ne.s32.totalorder %s82, %s84
      %p88 = scmp.eq.s32.totalorder %s32, 0
      %p89 = por %p87, %p88
      %p90 = scmp.ne.s32.totalorder %s82, %s84
      %p91 = scmp.eq.s32.totalorder %s37, 1
      %p92 = por %p90, %p91
      %p93 = scmp.ne.s32.totalorder %s84, %s85
      %p94 = scmp.eq.s32.totalorder %s37, 0
      %p95 = por %p93, %p94
      %p96 = scmp.ne.s32.totalorder %s84, %s85
      %p97 = scmp.eq.s32.totalorder %s38, 1
      %p98 = por %p96, %p97
      %p100 = scmp.ne.s32.totalorder %s85, %s99
      %p101 = scmp.eq.s32.totalorder %s38, 0
      %p102 = por %p100, %p101
      %s103 = ssub.s32 %s32, %s39
      %p104 = scmp.eq.s32.totalorder %s103, 0
      %s106 = sadd.s32 %s105, 1
      %s107 = scalar_select %p104, %s105, %s106
      %p110 = pneg %p104
      %p111 = scmp.eq.s32.totalorder %s32, 1
      %p112 = por %p110, %p111
      %p113 = scmp.ne.s32.totalorder %s105, %s108
      %p114 = scmp.eq.s32.totalorder %s32, 0
      %p115 = por %p113, %p114
      %p116 = scmp.ne.s32.totalorder %s105, %s108
      %p117 = scmp.eq.s32.totalorder %s37, 1
      %p118 = por %p116, %p117
      %p119 = scmp.ne.s32.totalorder %s108, %s109
      %p120 = scmp.eq.s32.totalorder %s37, 0
      %p121 = por %p119, %p120
      %p122 = scmp.ne.s32.totalorder %s108, %s109
      %p123 = scmp.eq.s32.totalorder %s38, 1
      %p124 = por %p122, %p123
      %p126 = scmp.ne.s32.totalorder %s109, %s125
      %p127 = scmp.eq.s32.totalorder %s38, 0
      %p128 = por %p126, %p127
      %s129 = ssub.s32 %s32, %s39
      %p130 = scmp.eq.s32.totalorder %s129, 0
      %s132 = sadd.s32 %s131, 1
      %s133 = scalar_select %p130, %s131, %s132
      %p136 = pneg %p130
      %p137 = scmp.eq.s32.totalorder %s32, 1
      %p138 = por %p136, %p137
      %p139 = scmp.ne.s32.totalorder %s131, %s134
      %p140 = scmp.eq.s32.totalorder %s32, 0
      %p141 = por %p139, %p140
      %p142 = scmp.ne.s32.totalorder %s131, %s134
      %p143 = scmp.eq.s32.totalorder %s37, 1
      %p144 = por %p142, %p143
      %p145 = scmp.ne.s32.totalorder %s134, %s135
      %p146 = scmp.eq.s32.totalorder %s37, 0
      %p147 = por %p145, %p146
      %p148 = scmp.ne.s32.totalorder %s134, %s135
      %p149 = scmp.eq.s32.totalorder %s38, 1
      %p150 = por %p148, %p149
      %p152 = scmp.ne.s32.totalorder %s135, %s151
      %p153 = scmp.eq.s32.totalorder %s38, 0
      %p154 = por %p152, %p153
      %s155 = ssub.s32 %s32, %s39
      %p156 = scmp.eq.s32.totalorder %s155, 0
      %s158 = sadd.s32 %s157, 1
      %s159 = scalar_select %p156, %s157, %s158
      %p162 = pneg %p156
      %p163 = scmp.eq.s32.totalorder %s32, 1
      %p164 = por %p162, %p163
      %p165 = scmp.ne.s32.totalorder %s157, %s160
      %p166 = scmp.eq.s32.totalorder %s32, 0
      %p167 = por %p165, %p166
      %p168 = scmp.ne.s32.totalorder %s157, %s160
      %p169 = scmp.eq.s32.totalorder %s37, 1
      %p170 = por %p168, %p169
      %p171 = scmp.ne.s32.totalorder %s160, %s161
      %p172 = scmp.eq.s32.totalorder %s37, 0
      %p173 = por %p171, %p172
      %p174 = scmp.ne.s32.totalorder %s160, %s161
      %p175 = scmp.eq.s32.totalorder %s38, 1
      %p176 = por %p174, %p175
      %p178 = scmp.ne.s32.totalorder %s161, %s177
      %p179 = scmp.eq.s32.totalorder %s38, 0
      %p180 = por %p178, %p179
      %s181 = ssub.s32 %s32, %s39
      %p182 = scmp.eq.s32.totalorder %s181, 0
      %s184 = sadd.s32 %s183, 1
      %s185 = scalar_select %p182, %s183, %s184
      %p188 = pneg %p182
      %p189 = scmp.eq.s32.totalorder %s32, 1
      %p190 = por %p188, %p189
      %p191 = scmp.ne.s32.totalorder %s183, %s186
      %p192 = scmp.eq.s32.totalorder %s32, 0
      %p193 = por %p191, %p192
      %p194 = scmp.ne.s32.totalorder %s183, %s186
      %p195 = scmp.eq.s32.totalorder %s37, 1
      %p196 = por %p194, %p195
      %p197 = scmp.ne.s32.totalorder %s186, %s187
      %p198 = scmp.eq.s32.totalorder %s37, 0
      %p199 = por %p197, %p198
      %p200 = scmp.ne.s32.totalorder %s186, %s187
      %p201 = scmp.eq.s32.totalorder %s38, 1
      %p202 = por %p200, %p201
      %p204 = scmp.ne.s32.totalorder %s187, %s203
      %p205 = scmp.eq.s32.totalorder %s38, 0
      %p206 = por %p204, %p205
      %s207 = ssub.s32 %s32, %s39
      %p208 = scmp.eq.s32.totalorder %s207, 0
      %s210 = sadd.s32 %s209, 1
      %s211 = scalar_select %p208, %s209, %s210
      %p214 = pneg %p208
      %p215 = scmp.eq.s32.totalorder %s32, 1
      %p216 = por %p214, %p215
      %p217 = scmp.ne.s32.totalorder %s209, %s212
      %p218 = scmp.eq.s32.totalorder %s32, 0
      %p219 = por %p217, %p218
      %p220 = scmp.ne.s32.totalorder %s209, %s212
      %p221 = scmp.eq.s32.totalorder %s37, 1
      %p222 = por %p220, %p221
      %p223 = scmp.ne.s32.totalorder %s212, %s213
      %p224 = scmp.eq.s32.totalorder %s37, 0
      %p225 = por %p223, %p224
      %p226 = scmp.ne.s32.totalorder %s212, %s213
      %p227 = scmp.eq.s32.totalorder %s38, 1
      %p228 = por %p226, %p227
      %p230 = scmp.ne.s32.totalorder %s213, %s229
      %p231 = scmp.eq.s32.totalorder %s38, 0
      %p232 = por %p230, %p231
      %s233 = ssub.s32 %s32, %s39
      %p234 = scmp.eq.s32.totalorder %s233, 0
      %s236 = sadd.s32 %s235, 1
      %s237 = scalar_select %p234, %s235, %s236
      %p240 = pneg %p234
      %p241 = scmp.eq.s32.totalorder %s32, 1
      %p242 = por %p240, %p241
      %p243 = scmp.ne.s32.totalorder %s235, %s238
      %p244 = scmp.eq.s32.totalorder %s32, 0
      %p245 = por %p243, %p244
      %p246 = scmp.ne.s32.totalorder %s235, %s238
      %p247 = scmp.eq.s32.totalorder %s37, 1
      %p248 = por %p246, %p247
      %p249 = scmp.ne.s32.totalorder %s238, %s239
      %p250 = scmp.eq.s32.totalorder %s37, 0
      %p251 = por %p249, %p250
      %p252 = scmp.ne.s32.totalorder %s238, %s239
      %p253 = scmp.eq.s32.totalorder %s38, 1
      %p254 = por %p252, %p253
      %p256 = scmp.ne.s32.totalorder %s239, %s255
      %p257 = scmp.eq.s32.totalorder %s38, 0
      %p258 = por %p256, %p257
      %s259 = ssub.s32 %s32, %s39
      %p260 = scmp.eq.s32.totalorder %s259, 0
      %s262 = sadd.s32 %s261, 1
      %s263 = scalar_select %p260, %s261, %s262
      %p266 = pneg %p260
      %p267 = scmp.eq.s32.totalorder %s32, 1
      %p268 = por %p266, %p267
      %p269 = scmp.ne.s32.totalorder %s261, %s264
      %p270 = scmp.eq.s32.totalorder %s32, 0
      %p271 = por %p269, %p270
      %p272 = scmp.ne.s32.totalorder %s261, %s264
      %p273 = scmp.eq.s32.totalorder %s37, 1
      %p274 = por %p272, %p273
      %p275 = scmp.ne.s32.totalorder %s264, %s265
      %p276 = scmp.eq.s32.totalorder %s37, 0
      %p277 = por %p275, %p276
      %p278 = scmp.ne.s32.totalorder %s264, %s265
      %p279 = scmp.eq.s32.totalorder %s38, 1
      %p280 = por %p278, %p279
      %p282 = scmp.ne.s32.totalorder %s265, %s281
      %p283 = scmp.eq.s32.totalorder %s38, 0
      %p284 = por %p282, %p283
      %s285 = ssub.s32 %s32, %s39
      %p286 = scmp.eq.s32.totalorder %s285, 0
      %s288 = sadd.s32 %s287, 1
      %s289 = scalar_select %p286, %s287, %s288
      %p292 = pneg %p286
      %p293 = scmp.eq.s32.totalorder %s32, 1
      %p294 = por %p292, %p293
      %p295 = scmp.ne.s32.totalorder %s287, %s290
      %p296 = scmp.eq.s32.totalorder %s32, 0
      %p297 = por %p295, %p296
      %p298 = scmp.ne.s32.totalorder %s287, %s290
      %p299 = scmp.eq.s32.totalorder %s37, 1
      %p300 = por %p298, %p299
      %p301 = scmp.ne.s32.totalorder %s290, %s291
      %p302 = scmp.eq.s32.totalorder %s37, 0
      %p303 = por %p301, %p302
      %p304 = scmp.ne.s32.totalorder %s290, %s291
      %p305 = scmp.eq.s32.totalorder %s38, 1
      %p306 = por %p304, %p305
      %p308 = scmp.ne.s32.totalorder %s291, %s307
      %p309 = scmp.eq.s32.totalorder %s38, 0
      %p310 = por %p308, %p309
      %s311 = ssub.s32 %s32, %s39
      %p312 = scmp.eq.s32.totalorder %s311, 0
      %s314 = sadd.s32 %s313, 1
      %s315 = scalar_select %p312, %s313, %s314
      %p318 = pneg %p312
      %p319 = scmp.eq.s32.totalorder %s32, 1
      %p320 = por %p318, %p319
      %p321 = scmp.ne.s32.totalorder %s313, %s316
      %p322 = scmp.eq.s32.totalorder %s32, 0
      %p323 = por %p321, %p322
      %p324 = scmp.ne.s32.totalorder %s313, %s316
      %p325 = scmp.eq.s32.totalorder %s37, 1
      %p326 = por %p324, %p325
      %p327 = scmp.ne.s32.totalorder %s316, %s317
      %p328 = scmp.eq.s32.totalorder %s37, 0
      %p329 = por %p327, %p328
      %p330 = scmp.ne.s32.totalorder %s316, %s317
      %p331 = scmp.eq.s32.totalorder %s38, 1
      %p332 = por %p330, %p331
      %p334 = scmp.ne.s32.totalorder %s317, %s333
      %p335 = scmp.eq.s32.totalorder %s38, 0
      %p336 = por %p334, %p335
      %s337 = ssub.s32 %s32, %s39
      %p338 = scmp.eq.s32.totalorder %s337, 0
      %s340 = sadd.s32 %s339, 1
      %s341 = scalar_select %p338, %s339, %s340
      %p344 = pneg %p338
      %p345 = scmp.eq.s32.totalorder %s32, 1
      %p346 = por %p344, %p345
      %p347 = scmp.ne.s32.totalorder %s339, %s342
      %p348 = scmp.eq.s32.totalorder %s32, 0
      %p349 = por %p347, %p348
      %p350 = scmp.ne.s32.totalorder %s339, %s342
      %p351 = scmp.eq.s32.totalorder %s37, 1
      %p352 = por %p350, %p351
      %p353 = scmp.ne.s32.totalorder %s342, %s343
      %p354 = scmp.eq.s32.totalorder %s37, 0
      %p355 = por %p353, %p354
      %p356 = scmp.ne.s32.totalorder %s342, %s343
      %p357 = scmp.eq.s32.totalorder %s38, 1
      %p358 = por %p356, %p357
      %p360 = scmp.ne.s32.totalorder %s343, %s359
      %p361 = scmp.eq.s32.totalorder %s38, 0
      %p362 = por %p360, %p361
      %s363 = ssub.s32 %s32, %s39
      %p364 = scmp.eq.s32.totalorder %s363, 0
      %s366 = sadd.s32 %s365, 1
      %s367 = scalar_select %p364, %s365, %s366
      %p370 = pneg %p364
      %p371 = scmp.eq.s32.totalorder %s32, 1
      %p372 = por %p370, %p371
      %p373 = scmp.ne.s32.totalorder %s365, %s368
      %p374 = scmp.eq.s32.totalorder %s32, 0
      %p375 = por %p373, %p374
      %p376 = scmp.ne.s32.totalorder %s365, %s368
      %p377 = scmp.eq.s32.totalorder %s37, 1
      %p378 = por %p376, %p377
      %p379 = scmp.ne.s32.totalorder %s368, %s369
      %p380 = scmp.eq.s32.totalorder %s37, 0
      %p381 = por %p379, %p380
      %p382 = scmp.ne.s32.totalorder %s368, %s369
      %p383 = scmp.eq.s32.totalorder %s38, 1
      %p384 = por %p382, %p383
      %p386 = scmp.ne.s32.totalorder %s369, %s385
      %p387 = scmp.eq.s32.totalorder %s38, 0
      %p388 = por %p386, %p387
      %s390 = sadd.s32 %s389, 1
      %p393 = scmp.eq.s32.totalorder %s32, 1
      %p394 = scmp.ne.s32.totalorder %s389, %s391
      %p395 = scmp.eq.s32.totalorder %s32, 0
      %p396 = por %p394, %p395
      %p397 = scmp.ne.s32.totalorder %s389, %s391
      %p398 = scmp.eq.s32.totalorder %s37, 1
      %p399 = por %p397, %p398
      %p400 = scmp.ne.s32.totalorder %s391, %s392
      %p401 = scmp.eq.s32.totalorder %s37, 0
      %p402 = por %p400, %p401
      %p403 = scmp.ne.s32.totalorder %s391, %s392
      %p404 = scmp.eq.s32.totalorder %s38, 1
      %p405 = por %p403, %p404
      %p407 = scmp.ne.s32.totalorder %s392, %s406
      %p408 = scmp.eq.s32.totalorder %s38, 0
      %p409 = por %p407, %p408
      %p410 = scmp.le.s32.totalorder 1, %s32
      %p411 = scmp.lt.s32.totalorder %s32, 3
      %p412 = pnand %p410, %p411
      %p413 = pneg %p412
      // Predicated region
      $region9: #{tpu_custom_call.1} parent=5 // pred_check
        _
      $region10: #{tpu_custom_call.1} parent=5 // pred_check_branch
        %415 = sbr.rel (%p412) target = $region12
      $region11: #{tpu_custom_call.1} parent=5 // pred_region
        %s416 = ssub.s32 %s32, 1
        // Predicated region
        $region13: #{tpu_custom_call.1} parent=11 // pred_check
          %p417 = pneg %p53
        $region14: #{tpu_custom_call.1} parent=11 // pred_check_branch
          %419 = sbr.rel (%p417) target = $region16
        $region15: #{tpu_custom_call.1} parent=11 // pred_region
          %421 = vsyncadd [#allocation4], 0
          %s422 = sshll.u32 %s0, 4
          %s423 = int_to_ptr.hbm [resolvable:$true] %s422
          %s424 = sshll.u32 [#allocation3], 4
          %s425 = int_to_ptr.vmem [resolvable:$true] %s424
          %430 = dma.hbm_to_vmem [thread:$0]  %s423, 2048, %s425, [#allocation4], 128, 128, 8
        $region16: #{tpu_custom_call.1} parent=11 // pred_fallthru
          _
        // Predicated region
        $region17: #{tpu_custom_call.1} parent=11 // pred_check
          %p431 = pneg %p74
        $region18: #{tpu_custom_call.1} parent=11 // pred_check_branch
          %433 = sbr.rel (%p431) target = $region20
        $region19: #{tpu_custom_call.1} parent=11 // pred_region
          %435 = vsyncadd [#allocation7], 0
          %s436 = sshll.u32 %s1, 4
          %s437 = int_to_ptr.hbm [resolvable:$true] %s436
          %s438 = sshll.u32 [#allocation6], 4
          %s439 = int_to_ptr.vmem [resolvable:$true] %s438
          %444 = dma.hbm_to_vmem [thread:$0]  %s437, 2048, %s439, [#allocation7], 128, 128, 8
        $region20: #{tpu_custom_call.1} parent=11 // pred_fallthru
          _
        // Predicated region
        $region21: #{tpu_custom_call.1} parent=11 // pred_check
          %p445 = pneg %p95
        $region22: #{tpu_custom_call.1} parent=11 // pred_check_branch
          %447 = sbr.rel (%p445) target = $region24
        $region23: #{tpu_custom_call.1} parent=11 // pred_region
          %449 = vsyncadd [#allocation7], 0
          %s450 = sshll.u32 %s2, 4
          %s451 = int_to_ptr.hbm [resolvable:$true] %s450
          %s452 = sshll.u32 [#allocation8], 4
          %s453 = int_to_ptr.vmem [resolvable:$true] %s452
          %458 = dma.hbm_to_vmem [thread:$0]  %s451, 4096, %s453, [#allocation7], 128, 128, 8
        $region24: #{tpu_custom_call.1} parent=11 // pred_fallthru
          _
      $region12: #{tpu_custom_call.1} parent=5 // pred_fallthru
        _
      %p459 = scmp.lt.s32.totalorder %s32, 2
      // Predicated region
      $region25: #{tpu_custom_call.1} parent=5 // pred_check
        %p460 = pneg %p459
      $region26: #{tpu_custom_call.1} parent=5 // pred_check_branch
        %462 = sbr.rel (%p460) target = $region28
      $region27: #{tpu_custom_call.1} parent=5 // pred_region
        // Predicated region
        $region29: #{tpu_custom_call.1} parent=27 // pred_check
          %p463 = pneg %p115
        $region30: #{tpu_custom_call.1} parent=27 // pred_check_branch
          %465 = sbr.rel (%p463) target = $region32
        $region31: #{tpu_custom_call.1} parent=27 // pred_region
          %p466 = scmp.lt.s32.totalorder %s32, 1
          %s467 = scalar_select %p466, %s32, 1
          %s468 = scalar_lea.vmem %s3, %s467
        $region32: #{tpu_custom_call.1} parent=27 // pred_fallthru
          _
        // Predicated region
        $region33: #{tpu_custom_call.1} parent=27 // pred_check
          %p469 = pneg %p141
        $region34: #{tpu_custom_call.1} parent=27 // pred_check_branch
          %471 = sbr.rel (%p469) target = $region36
        $region35: #{tpu_custom_call.1} parent=27 // pred_region
          %s472 = sand.u32 %s32, 1
          %s473 = scalar_lea.sflag [#allocation10], %s472
          %s474 = sand.u32 %s131, 1
          %s475 = scalar_lea.vmem [#allocation9], %s474
          %477 = vsyncadd %s473, 0
          %s478 = scalar_lea.hbm %s4, %s32
          %s480 = sshll.u32 %s478, 4
          %s481 = int_to_ptr.hbm [resolvable:$true] %s480
          %s482 = sshll.u32 %s475, 4
          %s483 = int_to_ptr.vmem [resolvable:$true] %s482
          %485 = dma.hbm_to_vmem [thread:$0]  %s481, 16, %s483, %s473
        $region36: #{tpu_custom_call.1} parent=27 // pred_fallthru
          _
        // Predicated region
        $region37: #{tpu_custom_call.1} parent=27 // pred_check
          %p486 = pneg %p167
        $region38: #{tpu_custom_call.1} parent=27 // pred_check_branch
          %488 = sbr.rel (%p486) target = $region40
        $region39: #{tpu_custom_call.1} parent=27 // pred_region
          %p489 = scmp.lt.s32.totalorder %s32, 1
          %s490 = scalar_select %p489, %s32, 1
          %s491 = scalar_lea.vmem %s5, %s490
        $region40: #{tpu_custom_call.1} parent=27 // pred_fallthru
          _
        // Predicated region
        $region41: #{tpu_custom_call.1} parent=27 // pred_check
          %p492 = pneg %p193
        $region42: #{tpu_custom_call.1} parent=27 // pred_check_branch
          %494 = sbr.rel (%p492) target = $region44
        $region43: #{tpu_custom_call.1} parent=27 // pred_region
          %s495 = sand.u32 %s32, 1
          %s496 = scalar_lea.sflag [#allocation10], %s495
          %s497 = sand.u32 %s183, 1
          %s498 = scalar_lea.vmem [#allocation11], %s497
          %500 = vsyncadd %s496, 0
          %s501 = scalar_lea.hbm %s6, %s32
          %s503 = sshll.u32 %s501, 4
          %s504 = int_to_ptr.hbm [resolvable:$true] %s503
          %s505 = sshll.u32 %s498, 4
          %s506 = int_to_ptr.vmem [resolvable:$true] %s505
          %508 = dma.hbm_to_vmem [thread:$0]  %s504, 16, %s506, %s496
        $region44: #{tpu_custom_call.1} parent=27 // pred_fallthru
          _
        // Predicated region
        $region45: #{tpu_custom_call.1} parent=27 // pred_check
          %p509 = pneg %p219
        $region46: #{tpu_custom_call.1} parent=27 // pred_check_branch
          %511 = sbr.rel (%p509) target = $region48
        $region47: #{tpu_custom_call.1} parent=27 // pred_region
          %p512 = scmp.lt.s32.totalorder %s32, 1
          %s513 = scalar_select %p512, %s32, 1
          %s514 = scalar_lea.vmem %s7, %s513
        $region48: #{tpu_custom_call.1} parent=27 // pred_fallthru
          _
        // Predicated region
        $region49: #{tpu_custom_call.1} parent=27 // pred_check
          %p515 = pneg %p245
        $region50: #{tpu_custom_call.1} parent=27 // pred_check_branch
          %517 = sbr.rel (%p515) target = $region52
        $region51: #{tpu_custom_call.1} parent=27 // pred_region
          %s518 = sand.u32 %s32, 1
          %s519 = scalar_lea.sflag [#allocation13], %s518
          %s520 = sand.u32 %s235, 1
          %s521 = smul.addr %s520, 128
          %s522 = scalar_lea.vmem [#allocation12], %s521
          %524 = vsyncadd %s519, 0
          %s525 = smul.addr %s32, 16
          %s526 = smul.addr %s525, 8
          %s527 = scalar_lea.hbm %s8, %s526
          %s528 = sshll.u32 %s527, 4
          %s529 = int_to_ptr.hbm [resolvable:$true] %s528
          %s530 = sshll.u32 %s522, 4
          %s531 = int_to_ptr.vmem [resolvable:$true] %s530
          %536 = dma.hbm_to_vmem [thread:$0]  %s529, 2048, %s531, %s519, 128, 128, 8
        $region52: #{tpu_custom_call.1} parent=27 // pred_fallthru
          _
        // Predicated region
        $region53: #{tpu_custom_call.1} parent=27 // pred_check
          %p537 = pneg %p271
        $region54: #{tpu_custom_call.1} parent=27 // pred_check_branch
          %539 = sbr.rel (%p537) target = $region56
        $region55: #{tpu_custom_call.1} parent=27 // pred_region
          %p540 = scmp.lt.s32.totalorder %s32, 1
          %s541 = scalar_select %p540, %s32, 1
          %s542 = scalar_lea.vmem %s9, %s541
        $region56: #{tpu_custom_call.1} parent=27 // pred_fallthru
          _
        // Predicated region
        $region57: #{tpu_custom_call.1} parent=27 // pred_check
          %p543 = pneg %p297
        $region58: #{tpu_custom_call.1} parent=27 // pred_check_branch
          %545 = sbr.rel (%p543) target = $region60
        $region59: #{tpu_custom_call.1} parent=27 // pred_region
          %s546 = sand.u32 %s32, 1
          %s547 = scalar_lea.sflag [#allocation13], %s546
          %s548 = sand.u32 %s287, 1
          %s549 = smul.addr %s548, 128
          %s550 = scalar_lea.vmem [#allocation14], %s549
          %552 = vsyncadd %s547, 0
          %s553 = smul.addr %s32, 16
          %s554 = smul.addr %s553, 8
          %s555 = scalar_lea.hbm %s10, %s554
          %s556 = sshll.u32 %s555, 4
          %s557 = int_to_ptr.hbm [resolvable:$true] %s556
          %s558 = sshll.u32 %s550, 4
          %s559 = int_to_ptr.vmem [resolvable:$true] %s558
          %564 = dma.hbm_to_vmem [thread:$0]  %s557, 2048, %s559, %s547, 128, 128, 8
        $region60: #{tpu_custom_call.1} parent=27 // pred_fallthru
          _
        // Predicated region
        $region61: #{tpu_custom_call.1} parent=27 // pred_check
          %p565 = pneg %p323
        $region62: #{tpu_custom_call.1} parent=27 // pred_check_branch
          %567 = sbr.rel (%p565) target = $region64
        $region63: #{tpu_custom_call.1} parent=27 // pred_region
          %p568 = scmp.lt.s32.totalorder %s32, 1
          %s569 = scalar_select %p568, %s32, 1
          %s570 = scalar_lea.vmem %s11, %s569
        $region64: #{tpu_custom_call.1} parent=27 // pred_fallthru
          _
        // Predicated region
        $region65: #{tpu_custom_call.1} parent=27 // pred_check
          %p571 = pneg %p349
        $region66: #{tpu_custom_call.1} parent=27 // pred_check_branch
          %573 = sbr.rel (%p571) target = $region68
        $region67: #{tpu_custom_call.1} parent=27 // pred_region
          %s574 = sand.u32 %s339, 1
          %s575 = scalar_lea.sflag [#allocation16], %s574
          %s576 = sand.u32 %s339, 1
          %s577 = smul.addr %s576, 128
          %s578 = scalar_lea.vmem [#allocation15], %s577
          %580 = vsyncadd %s575, 0
          %s581 = smul.addr %s32, 16
          %s582 = smul.addr %s581, 8
          %s583 = scalar_lea.hbm %s12, %s582
          %s584 = sshll.u32 %s583, 4
          %s585 = int_to_ptr.hbm [resolvable:$true] %s584
          %s586 = sshll.u32 %s578, 4
          %s587 = int_to_ptr.vmem [resolvable:$true] %s586
          %592 = dma.hbm_to_vmem [thread:$0]  %s585, 2048, %s587, %s575, 128, 128, 8
        $region68: #{tpu_custom_call.1} parent=27 // pred_fallthru
          _
        // Predicated region
        $region69: #{tpu_custom_call.1} parent=27 // pred_check
          %p593 = pneg %p375
        $region70: #{tpu_custom_call.1} parent=27 // pred_check_branch
          %595 = sbr.rel (%p593) target = $region72
        $region71: #{tpu_custom_call.1} parent=27 // pred_region
          %p596 = scmp.lt.s32.totalorder %s32, 1
          %s597 = scalar_select %p596, %s32, 1
          %s598 = scalar_lea.vmem %s13, %s597
        $region72: #{tpu_custom_call.1} parent=27 // pred_fallthru
          _
      $region28: #{tpu_custom_call.1} parent=5 // pred_fallthru
        _
      %p599 = scmp.le.s32.totalorder 1, %s32
      %p600 = scmp.lt.s32.totalorder %s32, 3
      %p601 = pnand %p599, %p600
      %p602 = pneg %p601
      // Predicated region
      $region73: #{tpu_custom_call.1} parent=5 // pred_check
        _
      $region74: #{tpu_custom_call.1} parent=5 // pred_check_branch
        %604 = sbr.rel (%p601) target = $region76
      $region75: #{tpu_custom_call.1} parent=5 // pred_region
        %s605 = ssub.s32 %s32, 1
        // Predicated region
        $region77: #{tpu_custom_call.1} parent=75 // pred_check
          %p606 = pneg %p53
        $region78: #{tpu_custom_call.1} parent=75 // pred_check_branch
          %608 = sbr.rel (%p606) target = $region80
        $region79: #{tpu_custom_call.1} parent=75 // pred_region
          %610 = dma.done [#allocation4], 2048
        $region80: #{tpu_custom_call.1} parent=75 // pred_fallthru
          _
        // Predicated region
        $region81: #{tpu_custom_call.1} parent=75 // pred_check
          %p611 = pneg %p74
        $region82: #{tpu_custom_call.1} parent=75 // pred_check_branch
          %613 = sbr.rel (%p611) target = $region84
        $region83: #{tpu_custom_call.1} parent=75 // pred_region
          %615 = dma.done [#allocation7], 2048
        $region84: #{tpu_custom_call.1} parent=75 // pred_fallthru
          _
        // Predicated region
        $region85: #{tpu_custom_call.1} parent=75 // pred_check
          %p616 = pneg %p95
        $region86: #{tpu_custom_call.1} parent=75 // pred_check_branch
          %618 = sbr.rel (%p616) target = $region88
        $region87: #{tpu_custom_call.1} parent=75 // pred_region
          %620 = dma.done [#allocation7], 4096
        $region88: #{tpu_custom_call.1} parent=75 // pred_fallthru
          _
        %s621 = sand.u32 %s37, 1
        %s622 = scalar_lea.sflag [#allocation10], %s621
        %s623 = sand.u32 %s134, 1
        %s624 = scalar_lea.vmem [#allocation9], %s623
        // Predicated region
        $region89: #{tpu_custom_call.1} parent=75 // pred_check
          %p625 = pneg %p147
        $region90: #{tpu_custom_call.1} parent=75 // pred_check_branch
          %627 = sbr.rel (%p625) target = $region92
        $region91: #{tpu_custom_call.1} parent=75 // pred_region
          %629 = dma.done %s622, 16
        $region92: #{tpu_custom_call.1} parent=75 // pred_fallthru
          _
        %s630 = sand.u32 %s37, 1
        %s631 = scalar_lea.sflag [#allocation10], %s630
        %s632 = sand.u32 %s186, 1
        %s633 = scalar_lea.vmem [#allocation11], %s632
        // Predicated region
        $region93: #{tpu_custom_call.1} parent=75 // pred_check
          %p634 = pneg %p199
        $region94: #{tpu_custom_call.1} parent=75 // pred_check_branch
          %636 = sbr.rel (%p634) target = $region96
        $region95: #{tpu_custom_call.1} parent=75 // pred_region
          %638 = dma.done %s631, 16
        $region96: #{tpu_custom_call.1} parent=75 // pred_fallthru
          _
        %s639 = sand.u32 %s37, 1
        %s640 = scalar_lea.sflag [#allocation13], %s639
        %s641 = sand.u32 %s238, 1
        %s642 = smul.addr %s641, 128
        %s643 = scalar_lea.vmem [#allocation12], %s642
        // Predicated region
        $region97: #{tpu_custom_call.1} parent=75 // pred_check
          %p644 = pneg %p251
        $region98: #{tpu_custom_call.1} parent=75 // pred_check_branch
          %646 = sbr.rel (%p644) target = $region100
        $region99: #{tpu_custom_call.1} parent=75 // pred_region
          %648 = dma.done %s640, 2048
        $region100: #{tpu_custom_call.1} parent=75 // pred_fallthru
          _
        %s649 = sand.u32 %s37, 1
        %s650 = scalar_lea.sflag [#allocation13], %s649
        %s651 = sand.u32 %s290, 1
        %s652 = smul.addr %s651, 128
        %s653 = scalar_lea.vmem [#allocation14], %s652
        // Predicated region
        $region101: #{tpu_custom_call.1} parent=75 // pred_check
          %p654 = pneg %p303
        $region102: #{tpu_custom_call.1} parent=75 // pred_check_branch
          %656 = sbr.rel (%p654) target = $region104
        $region103: #{tpu_custom_call.1} parent=75 // pred_region
          %658 = dma.done %s650, 2048
        $region104: #{tpu_custom_call.1} parent=75 // pred_fallthru
          _
        %s659 = sand.u32 %s342, 1
        %s660 = scalar_lea.sflag [#allocation16], %s659
        %s661 = sand.u32 %s342, 1
        %s662 = smul.addr %s661, 128
        %s663 = scalar_lea.vmem [#allocation15], %s662
        // Predicated region
        $region105: #{tpu_custom_call.1} parent=75 // pred_check
          %p664 = pneg %p355
        $region106: #{tpu_custom_call.1} parent=75 // pred_check_branch
          %666 = sbr.rel (%p664) target = $region108
        $region107: #{tpu_custom_call.1} parent=75 // pred_region
          %668 = dma.done %s660, 2048
        $region108: #{tpu_custom_call.1} parent=75 // pred_fallthru
          _
        %p669 = pneg %p53
        %p670 = pneg %p50
        %p671 = pneg %p74
        %p672 = pneg %p71
        %p673 = pneg %p95
        %p674 = pneg %p92
        %p675 = scmp.lt.s32.totalorder %s37, 1
        %s676 = scalar_select %p675, %s37, 1
        %s677 = scalar_lea.vmem %s3, %s676
        %p678 = pneg %p121
        %p679 = pneg %p118
        %s680 = sand.u32 %s37, 1
        %s681 = scalar_lea.sflag [#allocation10], %s680
        %s682 = sand.u32 %s134, 1
        %s683 = scalar_lea.vmem [#allocation9], %s682
        %p684 = pneg %p147
        %p685 = pneg %p144
        %p686 = scmp.lt.s32.totalorder %s37, 1
        %s687 = scalar_select %p686, %s37, 1
        %s688 = scalar_lea.vmem %s5, %s687
        %p689 = pneg %p173
        %p690 = pneg %p170
        %s691 = sand.u32 %s37, 1
        %s692 = scalar_lea.sflag [#allocation10], %s691
        %s693 = sand.u32 %s186, 1
        %s694 = scalar_lea.vmem [#allocation11], %s693
        %p695 = pneg %p199
        %p696 = pneg %p196
        %p697 = scmp.lt.s32.totalorder %s37, 1
        %s698 = scalar_select %p697, %s37, 1
        %s699 = scalar_lea.vmem %s7, %s698
        %p700 = pneg %p225
        %p701 = pneg %p222
        %s702 = sand.u32 %s37, 1
        %s703 = scalar_lea.sflag [#allocation13], %s702
        %s704 = sand.u32 %s238, 1
        %s705 = smul.addr %s704, 128
        %s706 = scalar_lea.vmem [#allocation12], %s705
        %p707 = pneg %p251
        %p708 = pneg %p248
        %p709 = scmp.lt.s32.totalorder %s37, 1
        %s710 = scalar_select %p709, %s37, 1
        %s711 = scalar_lea.vmem %s9, %s710
        %p712 = pneg %p277
        %p713 = pneg %p274
        %s714 = sand.u32 %s37, 1
        %s715 = scalar_lea.sflag [#allocation13], %s714
        %s716 = sand.u32 %s290, 1
        %s717 = smul.addr %s716, 128
        %s718 = scalar_lea.vmem [#allocation14], %s717
        %p719 = pneg %p303
        %p720 = pneg %p300
        %p721 = scmp.lt.s32.totalorder %s37, 1
        %s722 = scalar_select %p721, %s37, 1
        %s723 = scalar_lea.vmem %s11, %s722
        %p724 = pneg %p329
        %p725 = pneg %p326
        %s726 = sand.u32 %s342, 1
        %s727 = scalar_lea.sflag [#allocation16], %s726
        %s728 = sand.u32 %s342, 1
        %s729 = smul.addr %s728, 128
        %s730 = scalar_lea.vmem [#allocation15], %s729
        %p731 = pneg %p355
        %p732 = pneg %p352
        %p733 = scmp.lt.s32.totalorder %s37, 1
        %s734 = scalar_select %p733, %s37, 1
        %s735 = scalar_lea.vmem %s13, %s734
        %p736 = pneg %p381
        %p737 = pneg %p378
        %p738 = pneg %p402
        %p739 = pneg %p399
        %p740 = scmp.lt.s32.totalorder %s37, 1
        %s741 = scalar_select %p740, %s37, 1
        %s742 = scalar_lea.vmem %s3, %s741
        %p743 = scmp.lt.s32.totalorder %s37, 1
        %s744 = scalar_select %p743, %s37, 1
        %s745 = scalar_lea.vmem %s5, %s744
        %p746 = scmp.lt.s32.totalorder %s37, 1
        %s747 = scalar_select %p746, %s37, 1
        %s748 = scalar_lea.vmem %s7, %s747
        %p749 = scmp.lt.s32.totalorder %s37, 1
        %s750 = scalar_select %p749, %s37, 1
        %s751 = scalar_lea.vmem %s9, %s750
        %p752 = scmp.lt.s32.totalorder %s37, 1
        %s753 = scalar_select %p752, %s37, 1
        %s754 = scalar_lea.vmem %s11, %s753
        %p755 = scmp.lt.s32.totalorder %s37, 1
        %s756 = scalar_select %p755, %s37, 1
        %s757 = scalar_lea.vmem %s13, %s756
        %p758 = scmp.eq.s32.totalorder %s37, 0
        // Predicated region
        $region109: #{tpu_custom_call.1} parent=75 // pred_check
          %p759 = pneg %p758
        $region110: #{tpu_custom_call.1} parent=75 // pred_check_branch
          %761 = sbr.rel (%p759) target = $region112
        $region111: #{tpu_custom_call.1} parent=75 // pred_region
          %v762 = vld [vmem:[#allocation3] sm:$0xff]
          %v763 = vld [vmem:[#allocation3 + $0x8] sm:$0xff]
          %v764 = vld [vmem:[#allocation3 + $0x10] sm:$0xff]
          %v765 = vld [vmem:[#allocation3 + $0x18] sm:$0xff]
          %v766 = vld [vmem:[#allocation3 + $0x20] sm:$0xff]
          %v767 = vld [vmem:[#allocation3 + $0x28] sm:$0xff]
          %v768 = vld [vmem:[#allocation3 + $0x30] sm:$0xff]
          %v769 = vld [vmem:[#allocation3 + $0x38] sm:$0xff]
          %v770 = vld [vmem:[#allocation3 + $0x40] sm:$0xff]
          %v771 = vld [vmem:[#allocation3 + $0x48] sm:$0xff]
          %v772 = vld [vmem:[#allocation3 + $0x50] sm:$0xff]
          %v773 = vld [vmem:[#allocation3 + $0x58] sm:$0xff]
          %v774 = vld [vmem:[#allocation3 + $0x60] sm:$0xff]
          %v775 = vld [vmem:[#allocation3 + $0x68] sm:$0xff]
          %v776 = vld [vmem:[#allocation3 + $0x70] sm:$0xff]
          %v777 = vld [vmem:[#allocation3 + $0x78] sm:$0xff]
          %778 = vst [vmem:[#allocation2] sm:$0xff] %v762
          %779 = vst [vmem:[#allocation2 + $0x8] sm:$0xff] %v763
          %780 = vst [vmem:[#allocation2 + $0x10] sm:$0xff] %v764
          %781 = vst [vmem:[#allocation2 + $0x18] sm:$0xff] %v765
          %782 = vst [vmem:[#allocation2 + $0x20] sm:$0xff] %v766
          %783 = vst [vmem:[#allocation2 + $0x28] sm:$0xff] %v767
          %784 = vst [vmem:[#allocation2 + $0x30] sm:$0xff] %v768
          %785 = vst [vmem:[#allocation2 + $0x38] sm:$0xff] %v769
          %786 = vst [vmem:[#allocation2 + $0x40] sm:$0xff] %v770
          %787 = vst [vmem:[#allocation2 + $0x48] sm:$0xff] %v771
          %788 = vst [vmem:[#allocation2 + $0x50] sm:$0xff] %v772
          %789 = vst [vmem:[#allocation2 + $0x58] sm:$0xff] %v773
          %790 = vst [vmem:[#allocation2 + $0x60] sm:$0xff] %v774
          %791 = vst [vmem:[#allocation2 + $0x68] sm:$0xff] %v775
          %792 = vst [vmem:[#allocation2 + $0x70] sm:$0xff] %v776
          %793 = vst [vmem:[#allocation2 + $0x78] sm:$0xff] %v777
        $region112: #{tpu_custom_call.1} parent=75 // pred_fallthru
          _
        %v794 = vld [vmem:[#allocation2] sm:$0xff]
        %v795 = vld [vmem:[#allocation2 + $0x8] sm:$0xff]
        %v796 = vld [vmem:[#allocation2 + $0x10] sm:$0xff]
        %v797 = vld [vmem:[#allocation2 + $0x18] sm:$0xff]
        %v798 = vld [vmem:[#allocation2 + $0x20] sm:$0xff]
        %v799 = vld [vmem:[#allocation2 + $0x28] sm:$0xff]
        %v800 = vld [vmem:[#allocation2 + $0x30] sm:$0xff]
        %v801 = vld [vmem:[#allocation2 + $0x38] sm:$0xff]
        %v802 = vld [vmem:[#allocation2 + $0x40] sm:$0xff]
        %v803 = vld [vmem:[#allocation2 + $0x48] sm:$0xff]
        %v804 = vld [vmem:[#allocation2 + $0x50] sm:$0xff]
        %v805 = vld [vmem:[#allocation2 + $0x58] sm:$0xff]
        %v806 = vld [vmem:[#allocation2 + $0x60] sm:$0xff]
        %v807 = vld [vmem:[#allocation2 + $0x68] sm:$0xff]
        %v808 = vld [vmem:[#allocation2 + $0x70] sm:$0xff]
        %v809 = vld [vmem:[#allocation2 + $0x78] sm:$0xff]
        %v810 = vld [vmem:[%s633] sm:$0x1]
        %v811 = vadd.f32 %v810, 1e-05
        %v812 = vrsqrt.pop %v811
        %v813 = vmul.f32 %v812, %v811
        %v814 = vmul.f32 %v813, %v812
        %v815 = vmul.f32 0.5, %v814
        %v816 = vsub.f32 1.5, %v815
        %v817 = vmul.f32 %v812, %v816
        %vm818 = vweird.f32 %v811
        %vm819 = vweird.f32 %v812
        %vm820 = vmor %vm818, %vm819
        %v821 = vsel %vm820, %v812, %v817
        %v822 = vld [vmem:[%s742] sm:$0x1]
        %v823 = vmul.f32 %v821, %v822
        %v824 = vld [vmem:[%s745] sm:$0x1]
        %v826 = vperm.slane %v824, 0
        %v828 = vsub.f32 %v794, %v826
        %v829 = vsub.f32 %v795, %v826
        %v830 = vsub.f32 %v796, %v826
        %v831 = vsub.f32 %v797, %v826
        %v832 = vsub.f32 %v798, %v826
        %v833 = vsub.f32 %v799, %v826
        %v834 = vsub.f32 %v800, %v826
        %v835 = vsub.f32 %v801, %v826
        %v836 = vsub.f32 %v802, %v826
        %v837 = vsub.f32 %v803, %v826
        %v838 = vsub.f32 %v804, %v826
        %v839 = vsub.f32 %v805, %v826
        %v840 = vsub.f32 %v806, %v826
        %v841 = vsub.f32 %v807, %v826
        %v842 = vsub.f32 %v808, %v826
        %v843 = vsub.f32 %v809, %v826
        %v845 = vperm.slane %v823, 0
        %v847 = vmul.f32 %v828, %v845
        %v848 = vmul.f32 %v829, %v845
        %v849 = vmul.f32 %v830, %v845
        %v850 = vmul.f32 %v831, %v845
        %v851 = vmul.f32 %v832, %v845
        %v852 = vmul.f32 %v833, %v845
        %v853 = vmul.f32 %v834, %v845
        %v854 = vmul.f32 %v835, %v845
        %v855 = vmul.f32 %v836, %v845
        %v856 = vmul.f32 %v837, %v845
        %v857 = vmul.f32 %v838, %v845
        %v858 = vmul.f32 %v839, %v845
        %v859 = vmul.f32 %v840, %v845
        %v860 = vmul.f32 %v841, %v845
        %v861 = vmul.f32 %v842, %v845
        %v862 = vmul.f32 %v843, %v845
        %v863 = vld [vmem:[%s624] sm:$0x1]
        %v865 = vperm.slane %v863, 0
        %v867 = vadd.f32 %v847, %v865
        %v868 = vadd.f32 %v848, %v865
        %v869 = vadd.f32 %v849, %v865
        %v870 = vadd.f32 %v850, %v865
        %v871 = vadd.f32 %v851, %v865
        %v872 = vadd.f32 %v852, %v865
        %v873 = vadd.f32 %v853, %v865
        %v874 = vadd.f32 %v854, %v865
        %v875 = vadd.f32 %v855, %v865
        %v876 = vadd.f32 %v856, %v865
        %v877 = vadd.f32 %v857, %v865
        %v878 = vadd.f32 %v858, %v865
        %v879 = vadd.f32 %v859, %v865
        %v880 = vadd.f32 %v860, %v865
        %v881 = vadd.f32 %v861, %v865
        %v882 = vadd.f32 %v862, %v865
        %v883 = vld [vmem:[%s748] sm:$0x1]
        %v885 = vperm.slane %v883, 0
        %v887 = vmul.f32 %v867, %v885
        %v888 = vmul.f32 %v868, %v885
        %v889 = vmul.f32 %v869, %v885
        %v890 = vmul.f32 %v870, %v885
        %v891 = vmul.f32 %v871, %v885
        %v892 = vmul.f32 %v872, %v885
        %v893 = vmul.f32 %v873, %v885
        %v894 = vmul.f32 %v874, %v885
        %v895 = vmul.f32 %v875, %v885
        %v896 = vmul.f32 %v876, %v885
        %v897 = vmul.f32 %v877, %v885
        %v898 = vmul.f32 %v878, %v885
        %v899 = vmul.f32 %v879, %v885
        %v900 = vmul.f32 %v880, %v885
        %v901 = vmul.f32 %v881, %v885
        %v902 = vmul.f32 %v882, %v885
        %v903 = vmul.f32 %v887, %v887
        %v904 = vmul.f32 %v888, %v888
        %v905 = vmul.f32 %v889, %v889
        %v906 = vmul.f32 %v890, %v890
        %v907 = vmul.f32 %v891, %v891
        %v908 = vmul.f32 %v892, %v892
        %v909 = vmul.f32 %v893, %v893
        %v910 = vmul.f32 %v894, %v894
        %v911 = vmul.f32 %v895, %v895
        %v912 = vmul.f32 %v896, %v896
        %v913 = vmul.f32 %v897, %v897
        %v914 = vmul.f32 %v898, %v898
        %v915 = vmul.f32 %v899, %v899
        %v916 = vmul.f32 %v900, %v900
        %v917 = vmul.f32 %v901, %v901
        %v918 = vmul.f32 %v902, %v902
        %919 = vadd.xlane.f32.xlu0 %v903
        %v920 = vpop.xlane.xlu0 %919
        %921 = vadd.xlane.f32.xlu0 %v904
        %v922 = vpop.xlane.xlu0 %921
        %923 = vadd.xlane.f32.xlu0 %v905
        %v924 = vpop.xlane.xlu0 %923
        %925 = vadd.xlane.f32.xlu0 %v906
        %v926 = vpop.xlane.xlu0 %925
        %927 = vadd.xlane.f32.xlu0 %v907
        %v928 = vpop.xlane.xlu0 %927
        %929 = vadd.xlane.f32.xlu0 %v908
        %v930 = vpop.xlane.xlu0 %929
        %931 = vadd.xlane.f32.xlu0 %v909
        %v932 = vpop.xlane.xlu0 %931
        %933 = vadd.xlane.f32.xlu0 %v910
        %v934 = vpop.xlane.xlu0 %933
        %935 = vadd.xlane.f32.xlu0 %v911
        %v936 = vpop.xlane.xlu0 %935
        %937 = vadd.xlane.f32.xlu0 %v912
        %v938 = vpop.xlane.xlu0 %937
        %939 = vadd.xlane.f32.xlu0 %v913
        %v940 = vpop.xlane.xlu0 %939
        %941 = vadd.xlane.f32.xlu0 %v914
        %v942 = vpop.xlane.xlu0 %941
        %943 = vadd.xlane.f32.xlu0 %v915
        %v944 = vpop.xlane.xlu0 %943
        %945 = vadd.xlane.f32.xlu0 %v916
        %v946 = vpop.xlane.xlu0 %945
        %947 = vadd.xlane.f32.xlu0 %v917
        %v948 = vpop.xlane.xlu0 %947
        %949 = vadd.xlane.f32.xlu0 %v918
        %v950 = vpop.xlane.xlu0 %949
        %v951 = vmax.f32 %v920, 1e-12
        %v952 = vmax.f32 %v922, 1e-12
        %v953 = vmax.f32 %v924, 1e-12
        %v954 = vmax.f32 %v926, 1e-12
        %v955 = vmax.f32 %v928, 1e-12
        %v956 = vmax.f32 %v930, 1e-12
        %v957 = vmax.f32 %v932, 1e-12
        %v958 = vmax.f32 %v934, 1e-12
        %v959 = vmax.f32 %v936, 1e-12
        %v960 = vmax.f32 %v938, 1e-12
        %v961 = vmax.f32 %v940, 1e-12
        %v962 = vmax.f32 %v942, 1e-12
        %v963 = vmax.f32 %v944, 1e-12
        %v964 = vmax.f32 %v946, 1e-12
        %v965 = vmax.f32 %v948, 1e-12
        %v966 = vmax.f32 %v950, 1e-12
        %v967 = vrsqrt.pop %v951
        %v968 = vmul.f32 %v967, %v951
        %v969 = vmul.f32 %v968, %v967
        %v970 = vmul.f32 0.5, %v969
        %v971 = vsub.f32 1.5, %v970
        %v972 = vmul.f32 %v967, %v971
        %vm973 = vweird.f32 %v951
        %vm974 = vweird.f32 %v967
        %vm975 = vmor %vm973, %vm974
        %v976 = vsel %vm975, %v967, %v972
        %v977 = vrsqrt.pop %v952
        %v978 = vmul.f32 %v977, %v952
        %v979 = vmul.f32 %v978, %v977
        %v980 = vmul.f32 0.5, %v979
        %v981 = vsub.f32 1.5, %v980
        %v982 = vmul.f32 %v977, %v981
        %vm983 = vweird.f32 %v952
        %vm984 = vweird.f32 %v977
        %vm985 = vmor %vm983, %vm984
        %v986 = vsel %vm985, %v977, %v982
        %v987 = vrsqrt.pop %v953
        %v988 = vmul.f32 %v987, %v953
        %v989 = vmul.f32 %v988, %v987
        %v990 = vmul.f32 0.5, %v989
        %v991 = vsub.f32 1.5, %v990
        %v992 = vmul.f32 %v987, %v991
        %vm993 = vweird.f32 %v953
        %vm994 = vweird.f32 %v987
        %vm995 = vmor %vm993, %vm994
        %v996 = vsel %vm995, %v987, %v992
        %v997 = vrsqrt.pop %v954
        %v998 = vmul.f32 %v997, %v954
        %v999 = vmul.f32 %v998, %v997
        %v1000 = vmul.f32 0.5, %v999
        %v1001 = vsub.f32 1.5, %v1000
        %v1002 = vmul.f32 %v997, %v1001
        %vm1003 = vweird.f32 %v954
        %vm1004 = vweird.f32 %v997
        %vm1005 = vmor %vm1003, %vm1004
        %v1006 = vsel %vm1005, %v997, %v1002
        %v1007 = vrsqrt.pop %v955
        %v1008 = vmul.f32 %v1007, %v955
        %v1009 = vmul.f32 %v1008, %v1007
        %v1010 = vmul.f32 0.5, %v1009
        %v1011 = vsub.f32 1.5, %v1010
        %v1012 = vmul.f32 %v1007, %v1011
        %vm1013 = vweird.f32 %v955
        %vm1014 = vweird.f32 %v1007
        %vm1015 = vmor %vm1013, %vm1014
        %v1016 = vsel %vm1015, %v1007, %v1012
        %v1017 = vrsqrt.pop %v956
        %v1018 = vmul.f32 %v1017, %v956
        %v1019 = vmul.f32 %v1018, %v1017
        %v1020 = vmul.f32 0.5, %v1019
        %v1021 = vsub.f32 1.5, %v1020
        %v1022 = vmul.f32 %v1017, %v1021
        %vm1023 = vweird.f32 %v956
        %vm1024 = vweird.f32 %v1017
        %vm1025 = vmor %vm1023, %vm1024
        %v1026 = vsel %vm1025, %v1017, %v1022
        %v1027 = vrsqrt.pop %v957
        %v1028 = vmul.f32 %v1027, %v957
        %v1029 = vmul.f32 %v1028, %v1027
        %v1030 = vmul.f32 0.5, %v1029
        %v1031 = vsub.f32 1.5, %v1030
        %v1032 = vmul.f32 %v1027, %v1031
        %vm1033 = vweird.f32 %v957
        %vm1034 = vweird.f32 %v1027
        %vm1035 = vmor %vm1033, %vm1034
        %v1036 = vsel %vm1035, %v1027, %v1032
        %v1037 = vrsqrt.pop %v958
        %v1038 = vmul.f32 %v1037, %v958
        %v1039 = vmul.f32 %v1038, %v1037
        %v1040 = vmul.f32 0.5, %v1039
        %v1041 = vsub.f32 1.5, %v1040
        %v1042 = vmul.f32 %v1037, %v1041
        %vm1043 = vweird.f32 %v958
        %vm1044 = vweird.f32 %v1037
        %vm1045 = vmor %vm1043, %vm1044
        %v1046 = vsel %vm1045, %v1037, %v1042
        %v1047 = vrsqrt.pop %v959
        %v1048 = vmul.f32 %v1047, %v959
        %v1049 = vmul.f32 %v1048, %v1047
        %v1050 = vmul.f32 0.5, %v1049
        %v1051 = vsub.f32 1.5, %v1050
        %v1052 = vmul.f32 %v1047, %v1051
        %vm1053 = vweird.f32 %v959
        %vm1054 = vweird.f32 %v1047
        %vm1055 = vmor %vm1053, %vm1054
        %v1056 = vsel %vm1055, %v1047, %v1052
        %v1057 = vrsqrt.pop %v960
        %v1058 = vmul.f32 %v1057, %v960
        %v1059 = vmul.f32 %v1058, %v1057
        %v1060 = vmul.f32 0.5, %v1059
        %v1061 = vsub.f32 1.5, %v1060
        %v1062 = vmul.f32 %v1057, %v1061
        %vm1063 = vweird.f32 %v960
        %vm1064 = vweird.f32 %v1057
        %vm1065 = vmor %vm1063, %vm1064
        %v1066 = vsel %vm1065, %v1057, %v1062
        %v1067 = vrsqrt.pop %v961
        %v1068 = vmul.f32 %v1067, %v961
        %v1069 = vmul.f32 %v1068, %v1067
        %v1070 = vmul.f32 0.5, %v1069
        %v1071 = vsub.f32 1.5, %v1070
        %v1072 = vmul.f32 %v1067, %v1071
        %vm1073 = vweird.f32 %v961
        %vm1074 = vweird.f32 %v1067
        %vm1075 = vmor %vm1073, %vm1074
        %v1076 = vsel %vm1075, %v1067, %v1072
        %v1077 = vrsqrt.pop %v962
        %v1078 = vmul.f32 %v1077, %v962
        %v1079 = vmul.f32 %v1078, %v1077
        %v1080 = vmul.f32 0.5, %v1079
        %v1081 = vsub.f32 1.5, %v1080
        %v1082 = vmul.f32 %v1077, %v1081
        %vm1083 = vweird.f32 %v962
        %vm1084 = vweird.f32 %v1077
        %vm1085 = vmor %vm1083, %vm1084
        %v1086 = vsel %vm1085, %v1077, %v1082
        %v1087 = vrsqrt.pop %v963
        %v1088 = vmul.f32 %v1087, %v963
        %v1089 = vmul.f32 %v1088, %v1087
        %v1090 = vmul.f32 0.5, %v1089
        %v1091 = vsub.f32 1.5, %v1090
        %v1092 = vmul.f32 %v1087, %v1091
        %vm1093 = vweird.f32 %v963
        %vm1094 = vweird.f32 %v1087
        %vm1095 = vmor %vm1093, %vm1094
        %v1096 = vsel %vm1095, %v1087, %v1092
        %v1097 = vrsqrt.pop %v964
        %v1098 = vmul.f32 %v1097, %v964
        %v1099 = vmul.f32 %v1098, %v1097
        %v1100 = vmul.f32 0.5, %v1099
        %v1101 = vsub.f32 1.5, %v1100
        %v1102 = vmul.f32 %v1097, %v1101
        %vm1103 = vweird.f32 %v964
        %vm1104 = vweird.f32 %v1097
        %vm1105 = vmor %vm1103, %vm1104
        %v1106 = vsel %vm1105, %v1097, %v1102
        %v1107 = vrsqrt.pop %v965
        %v1108 = vmul.f32 %v1107, %v965
        %v1109 = vmul.f32 %v1108, %v1107
        %v1110 = vmul.f32 0.5, %v1109
        %v1111 = vsub.f32 1.5, %v1110
        %v1112 = vmul.f32 %v1107, %v1111
        %vm1113 = vweird.f32 %v965
        %vm1114 = vweird.f32 %v1107
        %vm1115 = vmor %vm1113, %vm1114
        %v1116 = vsel %vm1115, %v1107, %v1112
        %v1117 = vrsqrt.pop %v966
        %v1118 = vmul.f32 %v1117, %v966
        %v1119 = vmul.f32 %v1118, %v1117
        %v1120 = vmul.f32 0.5, %v1119
        %v1121 = vsub.f32 1.5, %v1120
        %v1122 = vmul.f32 %v1117, %v1121
        %vm1123 = vweird.f32 %v966
        %vm1124 = vweird.f32 %v1117
        %vm1125 = vmor %vm1123, %vm1124
        %v1126 = vsel %vm1125, %v1117, %v1122
        %v1127 = vmul.f32 %v887, %v976
        %v1128 = vmul.f32 %v888, %v986
        %v1129 = vmul.f32 %v889, %v996
        %v1130 = vmul.f32 %v890, %v1006
        %v1131 = vmul.f32 %v891, %v1016
        %v1132 = vmul.f32 %v892, %v1026
        %v1133 = vmul.f32 %v893, %v1036
        %v1134 = vmul.f32 %v894, %v1046
        %v1135 = vmul.f32 %v895, %v1056
        %v1136 = vmul.f32 %v896, %v1066
        %v1137 = vmul.f32 %v897, %v1076
        %v1138 = vmul.f32 %v898, %v1086
        %v1139 = vmul.f32 %v899, %v1096
        %v1140 = vmul.f32 %v900, %v1106
        %v1141 = vmul.f32 %v901, %v1116
        %v1142 = vmul.f32 %v902, %v1126
        %1143 = vmatpush.xpose.msra.mxu0 %v1142
        %1144 = vmatpush.xpose.msra.mxu0 %v1141
        %1145 = vmatpush.xpose.msra.mxu0 %v1140
        %1146 = vmatpush.xpose.msra.mxu0 %v1139
        %1147 = vmatpush.xpose.msra.mxu0 %v1138
        %1148 = vmatpush.xpose.msra.mxu0 %v1137
        %1149 = vmatpush.xpose.msra.mxu0 %v1136
        %1150 = vmatpush.xpose.msra.mxu0 %v1135
        %1151 = vmatpush.xpose.msra.mxu0 %v1134
        %1152 = vmatpush.xpose.msra.mxu0 %v1133
        %1153 = vmatpush.xpose.msra.mxu0 %v1132
        %1154 = vmatpush.xpose.msra.mxu0 %v1131
        %1155 = vmatpush.xpose.msra.mxu0 %v1130
        %1156 = vmatpush.xpose.msra.mxu0 %v1129
        %1157 = vmatpush.xpose.msra.mxu0 %v1128
        %1158 = vmatpush.xpose.msra.mxu0 %v1127
        %1159 = vmatmul.f32.gmra.mxu0 %v1127
        %v1160 = vpop.f32.mrf.mxu0
        %v1161 = vadd.f32 0.0, %v1160
        %1162 = vmatmul.f32.gmra.mxu0 %v1128
        %v1163 = vpop.f32.mrf.mxu0
        %v1164 = vadd.f32 0.0, %v1163
        %1165 = vmatmul.f32.gmra.mxu0 %v1129
        %v1166 = vpop.f32.mrf.mxu0
        %v1167 = vadd.f32 0.0, %v1166
        %1168 = vmatmul.f32.gmra.mxu0 %v1130
        %v1169 = vpop.f32.mrf.mxu0
        %v1170 = vadd.f32 0.0, %v1169
        %1171 = vmatmul.f32.gmra.mxu0 %v1131
        %v1172 = vpop.f32.mrf.mxu0
        %v1173 = vadd.f32 0.0, %v1172
        %1174 = vmatmul.f32.gmra.mxu0 %v1132
        %v1175 = vpop.f32.mrf.mxu0
        %v1176 = vadd.f32 0.0, %v1175
        %1177 = vmatmul.f32.gmra.mxu0 %v1133
        %v1178 = vpop.f32.mrf.mxu0
        %v1179 = vadd.f32 0.0, %v1178
        %1180 = vmatmul.f32.gmra.mxu0 %v1134
        %v1181 = vpop.f32.mrf.mxu0
        %v1182 = vadd.f32 0.0, %v1181
        %1183 = vmatmul.f32.gmra.mxu0 %v1135
        %v1184 = vpop.f32.mrf.mxu0
        %v1185 = vadd.f32 0.0, %v1184
        %1186 = vmatmul.f32.gmra.mxu0 %v1136
        %v1187 = vpop.f32.mrf.mxu0
        %v1188 = vadd.f32 0.0, %v1187
        %1189 = vmatmul.f32.gmra.mxu0 %v1137
        %v1190 = vpop.f32.mrf.mxu0
        %v1191 = vadd.f32 0.0, %v1190
        %1192 = vmatmul.f32.gmra.mxu0 %v1138
        %v1193 = vpop.f32.mrf.mxu0
        %v1194 = vadd.f32 0.0, %v1193
        %1195 = vmatmul.f32.gmra.mxu0 %v1139
        %v1196 = vpop.f32.mrf.mxu0
        %v1197 = vadd.f32 0.0, %v1196
        %1198 = vmatmul.f32.gmra.mxu0 %v1140
        %v1199 = vpop.f32.mrf.mxu0
        %v1200 = vadd.f32 0.0, %v1199
        %1201 = vmatmul.f32.gmra.mxu0 %v1141
        %v1202 = vpop.f32.mrf.mxu0
        %v1203 = vadd.f32 0.0, %v1202
        %1204 = vmatmul.f32.gmra.mxu0 %v1142
        %v1205 = vpop.f32.mrf.mxu0
        %v1206 = vadd.f32 0.0, %v1205
        %1207 = vdwg.mxu0
        %v1208 = vmax.f32 %v1161, 0.0
        %v1209 = vmax.f32 %v1164, 0.0
        %v1210 = vmax.f32 %v1167, 0.0
        %v1211 = vmax.f32 %v1170, 0.0
        %v1212 = vmax.f32 %v1173, 0.0
        %v1213 = vmax.f32 %v1176, 0.0
        %v1214 = vmax.f32 %v1179, 0.0
        %v1215 = vmax.f32 %v1182, 0.0
        %v1216 = vmax.f32 %v1185, 0.0
        %v1217 = vmax.f32 %v1188, 0.0
        %v1218 = vmax.f32 %v1191, 0.0
        %v1219 = vmax.f32 %v1194, 0.0
        %v1220 = vmax.f32 %v1197, 0.0
        %v1221 = vmax.f32 %v1200, 0.0
        %v1222 = vmax.f32 %v1203, 0.0
        %v1223 = vmax.f32 %v1206, 0.0
        %vm1224 = vcmp.gt.f32.partialorder %v1208, 0.3
        %vm1225 = vcmp.gt.f32.partialorder %v1209, 0.3
        %vm1226 = vcmp.gt.f32.partialorder %v1210, 0.3
        %vm1227 = vcmp.gt.f32.partialorder %v1211, 0.3
        %vm1228 = vcmp.gt.f32.partialorder %v1212, 0.3
        %vm1229 = vcmp.gt.f32.partialorder %v1213, 0.3
        %vm1230 = vcmp.gt.f32.partialorder %v1214, 0.3
        %vm1231 = vcmp.gt.f32.partialorder %v1215, 0.3
        %vm1232 = vcmp.gt.f32.partialorder %v1216, 0.3
        %vm1233 = vcmp.gt.f32.partialorder %v1217, 0.3
        %vm1234 = vcmp.gt.f32.partialorder %v1218, 0.3
        %vm1235 = vcmp.gt.f32.partialorder %v1219, 0.3
        %vm1236 = vcmp.gt.f32.partialorder %v1220, 0.3
        %vm1237 = vcmp.gt.f32.partialorder %v1221, 0.3
        %vm1238 = vcmp.gt.f32.partialorder %v1222, 0.3
        %vm1239 = vcmp.gt.f32.partialorder %v1223, 0.3
        %v1240 = vsel %vm1224, %v1208, 0.0
        %v1241 = vsel %vm1225, %v1209, 0.0
        %v1242 = vsel %vm1226, %v1210, 0.0
        %v1243 = vsel %vm1227, %v1211, 0.0
        %v1244 = vsel %vm1228, %v1212, 0.0
        %v1245 = vsel %vm1229, %v1213, 0.0
        %v1246 = vsel %vm1230, %v1214, 0.0
        %v1247 = vsel %vm1231, %v1215, 0.0
        %v1248 = vsel %vm1232, %v1216, 0.0
        %v1249 = vsel %vm1233, %v1217, 0.0
        %v1250 = vsel %vm1234, %v1218, 0.0
        %v1251 = vsel %vm1235, %v1219, 0.0
        %v1252 = vsel %vm1236, %v1220, 0.0
        %v1253 = vsel %vm1237, %v1221, 0.0
        %v1254 = vsel %vm1238, %v1222, 0.0
        %v1255 = vsel %vm1239, %v1223, 0.0
        %1256 = vadd.xlane.f32.xlu0 %v1240
        %v1257 = vpop.xlane.xlu0 %1256
        %1258 = vadd.xlane.f32.xlu0 %v1241
        %v1259 = vpop.xlane.xlu0 %1258
        %1260 = vadd.xlane.f32.xlu0 %v1242
        %v1261 = vpop.xlane.xlu0 %1260
        %1262 = vadd.xlane.f32.xlu0 %v1243
        %v1263 = vpop.xlane.xlu0 %1262
        %1264 = vadd.xlane.f32.xlu0 %v1244
        %v1265 = vpop.xlane.xlu0 %1264
        %1266 = vadd.xlane.f32.xlu0 %v1245
        %v1267 = vpop.xlane.xlu0 %1266
        %1268 = vadd.xlane.f32.xlu0 %v1246
        %v1269 = vpop.xlane.xlu0 %1268
        %1270 = vadd.xlane.f32.xlu0 %v1247
        %v1271 = vpop.xlane.xlu0 %1270
        %1272 = vadd.xlane.f32.xlu0 %v1248
        %v1273 = vpop.xlane.xlu0 %1272
        %1274 = vadd.xlane.f32.xlu0 %v1249
        %v1275 = vpop.xlane.xlu0 %1274
        %1276 = vadd.xlane.f32.xlu0 %v1250
        %v1277 = vpop.xlane.xlu0 %1276
        %1278 = vadd.xlane.f32.xlu0 %v1251
        %v1279 = vpop.xlane.xlu0 %1278
        %1280 = vadd.xlane.f32.xlu0 %v1252
        %v1281 = vpop.xlane.xlu0 %1280
        %1282 = vadd.xlane.f32.xlu0 %v1253
        %v1283 = vpop.xlane.xlu0 %1282
        %1284 = vadd.xlane.f32.xlu0 %v1254
        %v1285 = vpop.xlane.xlu0 %1284
        %1286 = vadd.xlane.f32.xlu0 %v1255
        %v1287 = vpop.xlane.xlu0 %1286
        %v1288 = vmax.f32 %v1257, 1e-12
        %v1289 = vmax.f32 %v1259, 1e-12
        %v1290 = vmax.f32 %v1261, 1e-12
        %v1291 = vmax.f32 %v1263, 1e-12
        %v1292 = vmax.f32 %v1265, 1e-12
        %v1293 = vmax.f32 %v1267, 1e-12
        %v1294 = vmax.f32 %v1269, 1e-12
        %v1295 = vmax.f32 %v1271, 1e-12
        %v1296 = vmax.f32 %v1273, 1e-12
        %v1297 = vmax.f32 %v1275, 1e-12
        %v1298 = vmax.f32 %v1277, 1e-12
        %v1299 = vmax.f32 %v1279, 1e-12
        %v1300 = vmax.f32 %v1281, 1e-12
        %v1301 = vmax.f32 %v1283, 1e-12
        %v1302 = vmax.f32 %v1285, 1e-12
        %v1303 = vmax.f32 %v1287, 1e-12
        %v1304 = vrcp.pop %v1288
        %v1305 = vrcp.pop %v1289
        %v1306 = vrcp.pop %v1290
        %v1307 = vrcp.pop %v1291
        %v1308 = vrcp.pop %v1292
        %v1309 = vrcp.pop %v1293
        %v1310 = vrcp.pop %v1294
        %v1311 = vrcp.pop %v1295
        %v1312 = vrcp.pop %v1296
        %v1313 = vrcp.pop %v1297
        %v1314 = vrcp.pop %v1298
        %v1315 = vrcp.pop %v1299
        %v1316 = vrcp.pop %v1300
        %v1317 = vrcp.pop %v1301
        %v1318 = vrcp.pop %v1302
        %v1319 = vrcp.pop %v1303
        %v1320 = vld [vmem:[#allocation6] sm:$0xff]
        %v1321 = vld [vmem:[#allocation6 + $0x8] sm:$0xff]
        %v1322 = vld [vmem:[#allocation6 + $0x10] sm:$0xff]
        %v1323 = vld [vmem:[#allocation6 + $0x18] sm:$0xff]
        %v1324 = vld [vmem:[#allocation6 + $0x20] sm:$0xff]
        %v1325 = vld [vmem:[#allocation6 + $0x28] sm:$0xff]
        %v1326 = vld [vmem:[#allocation6 + $0x30] sm:$0xff]
        %v1327 = vld [vmem:[#allocation6 + $0x38] sm:$0xff]
        %v1328 = vld [vmem:[#allocation6 + $0x40] sm:$0xff]
        %v1329 = vld [vmem:[#allocation6 + $0x48] sm:$0xff]
        %v1330 = vld [vmem:[#allocation6 + $0x50] sm:$0xff]
        %v1331 = vld [vmem:[#allocation6 + $0x58] sm:$0xff]
        %v1332 = vld [vmem:[#allocation6 + $0x60] sm:$0xff]
        %v1333 = vld [vmem:[#allocation6 + $0x68] sm:$0xff]
        %v1334 = vld [vmem:[#allocation6 + $0x70] sm:$0xff]
        %v1335 = vld [vmem:[#allocation6 + $0x78] sm:$0xff]
        %v1336 = vmul.f32 %v1320, 0.7
        %v1337 = vmul.f32 %v1321, 0.7
        %v1338 = vmul.f32 %v1322, 0.7
        %v1339 = vmul.f32 %v1323, 0.7
        %v1340 = vmul.f32 %v1324, 0.7
        %v1341 = vmul.f32 %v1325, 0.7
        %v1342 = vmul.f32 %v1326, 0.7
        %v1343 = vmul.f32 %v1327, 0.7
        %v1344 = vmul.f32 %v1328, 0.7
        %v1345 = vmul.f32 %v1329, 0.7
        %v1346 = vmul.f32 %v1330, 0.7
        %v1347 = vmul.f32 %v1331, 0.7
        %v1348 = vmul.f32 %v1332, 0.7
        %v1349 = vmul.f32 %v1333, 0.7
        %v1350 = vmul.f32 %v1334, 0.7
        %v1351 = vmul.f32 %v1335, 0.7
        %v1352 = vmul.f32 %v1240, %v1304
        %v1353 = vmul.f32 %v1241, %v1305
        %v1354 = vmul.f32 %v1242, %v1306
        %v1355 = vmul.f32 %v1243, %v1307
        %v1356 = vmul.f32 %v1244, %v1308
        %v1357 = vmul.f32 %v1245, %v1309
        %v1358 = vmul.f32 %v1246, %v1310
        %v1359 = vmul.f32 %v1247, %v1311
        %v1360 = vmul.f32 %v1248, %v1312
        %v1361 = vmul.f32 %v1249, %v1313
        %v1362 = vmul.f32 %v1250, %v1314
        %v1363 = vmul.f32 %v1251, %v1315
        %v1364 = vmul.f32 %v1252, %v1316
        %v1365 = vmul.f32 %v1253, %v1317
        %v1366 = vmul.f32 %v1254, %v1318
        %v1367 = vmul.f32 %v1255, %v1319
        %v1368 = vmul.f32 %v1352, 0.3
        %v1369 = vmul.f32 %v1353, 0.3
        %v1370 = vmul.f32 %v1354, 0.3
        %v1371 = vmul.f32 %v1355, 0.3
        %v1372 = vmul.f32 %v1356, 0.3
        %v1373 = vmul.f32 %v1357, 0.3
        %v1374 = vmul.f32 %v1358, 0.3
        %v1375 = vmul.f32 %v1359, 0.3
        %v1376 = vmul.f32 %v1360, 0.3
        %v1377 = vmul.f32 %v1361, 0.3
        %v1378 = vmul.f32 %v1362, 0.3
        %v1379 = vmul.f32 %v1363, 0.3
        %v1380 = vmul.f32 %v1364, 0.3
        %v1381 = vmul.f32 %v1365, 0.3
        %v1382 = vmul.f32 %v1366, 0.3
        %v1383 = vmul.f32 %v1367, 0.3
        %v1384 = vadd.f32 %v1336, %v1368
        %v1385 = vadd.f32 %v1337, %v1369
        %v1386 = vadd.f32 %v1338, %v1370
        %v1387 = vadd.f32 %v1339, %v1371
        %v1388 = vadd.f32 %v1340, %v1372
        %v1389 = vadd.f32 %v1341, %v1373
        %v1390 = vadd.f32 %v1342, %v1374
        %v1391 = vadd.f32 %v1343, %v1375
        %v1392 = vadd.f32 %v1344, %v1376
        %v1393 = vadd.f32 %v1345, %v1377
        %v1394 = vadd.f32 %v1346, %v1378
        %v1395 = vadd.f32 %v1347, %v1379
        %v1396 = vadd.f32 %v1348, %v1380
        %v1397 = vadd.f32 %v1349, %v1381
        %v1398 = vadd.f32 %v1350, %v1382
        %v1399 = vadd.f32 %v1351, %v1383
        %v1400 = vmax.f32 %v867, 0.0
        %v1401 = vmax.f32 %v868, 0.0
        %v1402 = vmax.f32 %v869, 0.0
        %v1403 = vmax.f32 %v870, 0.0
        %v1404 = vmax.f32 %v871, 0.0
        %v1405 = vmax.f32 %v872, 0.0
        %v1406 = vmax.f32 %v873, 0.0
        %v1407 = vmax.f32 %v874, 0.0
        %v1408 = vmax.f32 %v875, 0.0
        %v1409 = vmax.f32 %v876, 0.0
        %v1410 = vmax.f32 %v877, 0.0
        %v1411 = vmax.f32 %v878, 0.0
        %v1412 = vmax.f32 %v879, 0.0
        %v1413 = vmax.f32 %v880, 0.0
        %v1414 = vmax.f32 %v881, 0.0
        %v1415 = vmax.f32 %v882, 0.0
        %v1416 = vld [vmem:[%s643] sm:$0xff]
        %v1417 = vld [vmem:[%s643 + $0x8] sm:$0xff]
        %v1418 = vld [vmem:[%s643 + $0x10] sm:$0xff]
        %v1419 = vld [vmem:[%s643 + $0x18] sm:$0xff]
        %v1420 = vld [vmem:[%s643 + $0x20] sm:$0xff]
        %v1421 = vld [vmem:[%s643 + $0x28] sm:$0xff]
        %v1422 = vld [vmem:[%s643 + $0x30] sm:$0xff]
        %v1423 = vld [vmem:[%s643 + $0x38] sm:$0xff]
        %v1424 = vld [vmem:[%s643 + $0x40] sm:$0xff]
        %v1425 = vld [vmem:[%s643 + $0x48] sm:$0xff]
        %v1426 = vld [vmem:[%s643 + $0x50] sm:$0xff]
        %v1427 = vld [vmem:[%s643 + $0x58] sm:$0xff]
        %v1428 = vld [vmem:[%s643 + $0x60] sm:$0xff]
        %v1429 = vld [vmem:[%s643 + $0x68] sm:$0xff]
        %v1430 = vld [vmem:[%s643 + $0x70] sm:$0xff]
        %v1431 = vld [vmem:[%s643 + $0x78] sm:$0xff]
        %v1432 = vld [vmem:[%s751] sm:$0x1]
        %v1434 = vperm.slane %v1432, 0
        %1436 = vmatpush.msra.mxu0 %v1431
        %1437 = vmatpush.msra.mxu0 %v1430
        %1438 = vmatpush.msra.mxu0 %v1429
        %1439 = vmatpush.msra.mxu0 %v1428
        %1440 = vmatpush.msra.mxu0 %v1427
        %1441 = vmatpush.msra.mxu0 %v1426
        %1442 = vmatpush.msra.mxu0 %v1425
        %1443 = vmatpush.msra.mxu0 %v1424
        %1444 = vmatpush.msra.mxu0 %v1423
        %1445 = vmatpush.msra.mxu0 %v1422
        %1446 = vmatpush.msra.mxu0 %v1421
        %1447 = vmatpush.msra.mxu0 %v1420
        %1448 = vmatpush.msra.mxu0 %v1419
        %1449 = vmatpush.msra.mxu0 %v1418
        %1450 = vmatpush.msra.mxu0 %v1417
        %1451 = vmatpush.msra.mxu0 %v1416
        %1452 = vmatmul.f32.gmra.mxu0 %v1400
        %v1453 = vpop.f32.mrf.mxu0
        %v1454 = vadd.f32 %v1434, %v1453
        %1455 = vmatmul.f32.gmra.mxu0 %v1401
        %v1456 = vpop.f32.mrf.mxu0
        %v1457 = vadd.f32 %v1434, %v1456
        %1458 = vmatmul.f32.gmra.mxu0 %v1402
        %v1459 = vpop.f32.mrf.mxu0
        %v1460 = vadd.f32 %v1434, %v1459
        %1461 = vmatmul.f32.gmra.mxu0 %v1403
        %v1462 = vpop.f32.mrf.mxu0
        %v1463 = vadd.f32 %v1434, %v1462
        %1464 = vmatmul.f32.gmra.mxu0 %v1404
        %v1465 = vpop.f32.mrf.mxu0
        %v1466 = vadd.f32 %v1434, %v1465
        %1467 = vmatmul.f32.gmra.mxu0 %v1405
        %v1468 = vpop.f32.mrf.mxu0
        %v1469 = vadd.f32 %v1434, %v1468
        %1470 = vmatmul.f32.gmra.mxu0 %v1406
        %v1471 = vpop.f32.mrf.mxu0
        %v1472 = vadd.f32 %v1434, %v1471
        %1473 = vmatmul.f32.gmra.mxu0 %v1407
        %v1474 = vpop.f32.mrf.mxu0
        %v1475 = vadd.f32 %v1434, %v1474
        %1476 = vmatmul.f32.gmra.mxu0 %v1408
        %v1477 = vpop.f32.mrf.mxu0
        %v1478 = vadd.f32 %v1434, %v1477
        %1479 = vmatmul.f32.gmra.mxu0 %v1409
        %v1480 = vpop.f32.mrf.mxu0
        %v1481 = vadd.f32 %v1434, %v1480
        %1482 = vmatmul.f32.gmra.mxu0 %v1410
        %v1483 = vpop.f32.mrf.mxu0
        %v1484 = vadd.f32 %v1434, %v1483
        %1485 = vmatmul.f32.gmra.mxu0 %v1411
        %v1486 = vpop.f32.mrf.mxu0
        %v1487 = vadd.f32 %v1434, %v1486
        %1488 = vmatmul.f32.gmra.mxu0 %v1412
        %v1489 = vpop.f32.mrf.mxu0
        %v1490 = vadd.f32 %v1434, %v1489
        %1491 = vmatmul.f32.gmra.mxu0 %v1413
        %v1492 = vpop.f32.mrf.mxu0
        %v1493 = vadd.f32 %v1434, %v1492
        %1494 = vmatmul.f32.gmra.mxu0 %v1414
        %v1495 = vpop.f32.mrf.mxu0
        %v1496 = vadd.f32 %v1434, %v1495
        %1497 = vmatmul.f32.gmra.mxu0 %v1415
        %v1498 = vpop.f32.mrf.mxu0
        %v1499 = vadd.f32 %v1434, %v1498
        %1500 = vdwg.mxu0
        %v1501 = vadd.f32 %v1384, %v1385
        %v1502 = vadd.f32 %v1501, %v1386
        %v1503 = vadd.f32 %v1502, %v1387
        %v1504 = vadd.f32 %v1503, %v1388
        %v1505 = vadd.f32 %v1504, %v1389
        %v1506 = vadd.f32 %v1505, %v1390
        %v1507 = vadd.f32 %v1506, %v1391
        %v1508 = vadd.f32 %v1507, %v1392
        %v1509 = vadd.f32 %v1508, %v1393
        %v1510 = vadd.f32 %v1509, %v1394
        %v1511 = vadd.f32 %v1510, %v1395
        %v1512 = vadd.f32 %v1511, %v1396
        %v1513 = vadd.f32 %v1512, %v1397
        %v1514 = vadd.f32 %v1513, %v1398
        %v1515 = vadd.f32 %v1514, %v1399
        %v1516 = vrot.slane %v1515, 4
        %v1517 = vadd.f32 %v1515, %v1516
        %v1518 = vrot.slane %v1517, 2
        %v1519 = vadd.f32 %v1517, %v1518
        %v1520 = vrot.slane %v1519, 1
        %v1521 = vadd.f32 %v1519, %v1520
        %v1522 = vcvt.f32.s32.to.zero.pseudo %v1521
        %vm1523 = vcmp.gt.s32.totalorder %v1522, 0
        %v1524 = vsel %vm1523, %v1522, 0
        %vm1525 = vcmp.lt.s32.totalorder %v1524, 255
        %v1526 = vsel %vm1525, %v1524, 255
        %v1527 = vlaneseq
        %v1528 = vshrl.u32 %v1527, 7
        %v1529 = vadd.s32 %v1528, 8
        %v1530 = vadd.s32 %v1528, 16
        %v1531 = vadd.s32 %v1528, 24
        %v1532 = vadd.s32 %v1528, 32
        %v1533 = vadd.s32 %v1528, 40
        %v1534 = vadd.s32 %v1528, 48
        %v1535 = vadd.s32 %v1528, 56
        %v1536 = vadd.s32 %v1528, 64
        %v1537 = vadd.s32 %v1528, 72
        %v1538 = vadd.s32 %v1528, 80
        %v1539 = vadd.s32 %v1528, 88
        %v1540 = vadd.s32 %v1528, 96
        %v1541 = vadd.s32 %v1528, 104
        %v1542 = vadd.s32 %v1528, 112
        %v1543 = vadd.s32 %v1528, 120
        %v1544 = vadd.s32 %v1528, 128
        %v1545 = vadd.s32 %v1528, 136
        %v1546 = vadd.s32 %v1528, 144
        %v1547 = vadd.s32 %v1528, 152
        %v1548 = vadd.s32 %v1528, 160
        %v1549 = vadd.s32 %v1528, 168
        %v1550 = vadd.s32 %v1528, 176
        %v1551 = vadd.s32 %v1528, 184
        %v1552 = vadd.s32 %v1528, 192
        %v1553 = vadd.s32 %v1528, 200
        %v1554 = vadd.s32 %v1528, 208
        %v1555 = vadd.s32 %v1528, 216
        %v1556 = vadd.s32 %v1528, 224
        %v1557 = vadd.s32 %v1528, 232
        %v1558 = vadd.s32 %v1528, 240
        %v1559 = vadd.s32 %v1528, 248
        %vm1560 = vcmp.eq.s32.totalorder %v1528, %v1526
        %vm1561 = vcmp.eq.s32.totalorder %v1529, %v1526
        %vm1562 = vcmp.eq.s32.totalorder %v1530, %v1526
        %vm1563 = vcmp.eq.s32.totalorder %v1531, %v1526
        %vm1564 = vcmp.eq.s32.totalorder %v1532, %v1526
        %vm1565 = vcmp.eq.s32.totalorder %v1533, %v1526
        %vm1566 = vcmp.eq.s32.totalorder %v1534, %v1526
        %vm1567 = vcmp.eq.s32.totalorder %v1535, %v1526
        %vm1568 = vcmp.eq.s32.totalorder %v1536, %v1526
        %vm1569 = vcmp.eq.s32.totalorder %v1537, %v1526
        %vm1570 = vcmp.eq.s32.totalorder %v1538, %v1526
        %vm1571 = vcmp.eq.s32.totalorder %v1539, %v1526
        %vm1572 = vcmp.eq.s32.totalorder %v1540, %v1526
        %vm1573 = vcmp.eq.s32.totalorder %v1541, %v1526
        %vm1574 = vcmp.eq.s32.totalorder %v1542, %v1526
        %vm1575 = vcmp.eq.s32.totalorder %v1543, %v1526
        %vm1576 = vcmp.eq.s32.totalorder %v1544, %v1526
        %vm1577 = vcmp.eq.s32.totalorder %v1545, %v1526
        %vm1578 = vcmp.eq.s32.totalorder %v1546, %v1526
        %vm1579 = vcmp.eq.s32.totalorder %v1547, %v1526
        %vm1580 = vcmp.eq.s32.totalorder %v1548, %v1526
        %vm1581 = vcmp.eq.s32.totalorder %v1549, %v1526
        %vm1582 = vcmp.eq.s32.totalorder %v1550, %v1526
        %vm1583 = vcmp.eq.s32.totalorder %v1551, %v1526
        %vm1584 = vcmp.eq.s32.totalorder %v1552, %v1526
        %vm1585 = vcmp.eq.s32.totalorder %v1553, %v1526
        %vm1586 = vcmp.eq.s32.totalorder %v1554, %v1526
        %vm1587 = vcmp.eq.s32.totalorder %v1555, %v1526
        %vm1588 = vcmp.eq.s32.totalorder %v1556, %v1526
        %vm1589 = vcmp.eq.s32.totalorder %v1557, %v1526
        %vm1590 = vcmp.eq.s32.totalorder %v1558, %v1526
        %vm1591 = vcmp.eq.s32.totalorder %v1559, %v1526
        %v1592 = vsel %vm1560, 1, 0
        %v1593 = vsel %vm1561, 1, 0
        %v1594 = vsel %vm1562, 1, 0
        %v1595 = vsel %vm1563, 1, 0
        %v1596 = vsel %vm1564, 1, 0
        %v1597 = vsel %vm1565, 1, 0
        %v1598 = vsel %vm1566, 1, 0
        %v1599 = vsel %vm1567, 1, 0
        %v1600 = vsel %vm1568, 1, 0
        %v1601 = vsel %vm1569, 1, 0
        %v1602 = vsel %vm1570, 1, 0
        %v1603 = vsel %vm1571, 1, 0
        %v1604 = vsel %vm1572, 1, 0
        %v1605 = vsel %vm1573, 1, 0
        %v1606 = vsel %vm1574, 1, 0
        %v1607 = vsel %vm1575, 1, 0
        %v1608 = vsel %vm1576, 1, 0
        %v1609 = vsel %vm1577, 1, 0
        %v1610 = vsel %vm1578, 1, 0
        %v1611 = vsel %vm1579, 1, 0
        %v1612 = vsel %vm1580, 1, 0
        %v1613 = vsel %vm1581, 1, 0
        %v1614 = vsel %vm1582, 1, 0
        %v1615 = vsel %vm1583, 1, 0
        %v1616 = vsel %vm1584, 1, 0
        %v1617 = vsel %vm1585, 1, 0
        %v1618 = vsel %vm1586, 1, 0
        %v1619 = vsel %vm1587, 1, 0
        %v1620 = vsel %vm1588, 1, 0
        %v1621 = vsel %vm1589, 1, 0
        %v1622 = vsel %vm1590, 1, 0
        %v1623 = vsel %vm1591, 1, 0
        %v1624 = vcvt.s32.f32 %v1592
        %v1625 = vcvt.s32.f32 %v1593
        %v1626 = vcvt.s32.f32 %v1594
        %v1627 = vcvt.s32.f32 %v1595
        %v1628 = vcvt.s32.f32 %v1596
        %v1629 = vcvt.s32.f32 %v1597
        %v1630 = vcvt.s32.f32 %v1598
        %v1631 = vcvt.s32.f32 %v1599
        %v1632 = vcvt.s32.f32 %v1600
        %v1633 = vcvt.s32.f32 %v1601
        %v1634 = vcvt.s32.f32 %v1602
        %v1635 = vcvt.s32.f32 %v1603
        %v1636 = vcvt.s32.f32 %v1604
        %v1637 = vcvt.s32.f32 %v1605
        %v1638 = vcvt.s32.f32 %v1606
        %v1639 = vcvt.s32.f32 %v1607
        %v1640 = vcvt.s32.f32 %v1608
        %v1641 = vcvt.s32.f32 %v1609
        %v1642 = vcvt.s32.f32 %v1610
        %v1643 = vcvt.s32.f32 %v1611
        %v1644 = vcvt.s32.f32 %v1612
        %v1645 = vcvt.s32.f32 %v1613
        %v1646 = vcvt.s32.f32 %v1614
        %v1647 = vcvt.s32.f32 %v1615
        %v1648 = vcvt.s32.f32 %v1616
        %v1649 = vcvt.s32.f32 %v1617
        %v1650 = vcvt.s32.f32 %v1618
        %v1651 = vcvt.s32.f32 %v1619
        %v1652 = vcvt.s32.f32 %v1620
        %v1653 = vcvt.s32.f32 %v1621
        %v1654 = vcvt.s32.f32 %v1622
        %v1655 = vcvt.s32.f32 %v1623
        %v1656 = vld [vmem:[#allocation8] sm:$0xff]
        %v1657 = vld [vmem:[#allocation8 + $0x8] sm:$0xff]
        %v1658 = vld [vmem:[#allocation8 + $0x10] sm:$0xff]
        %v1659 = vld [vmem:[#allocation8 + $0x18] sm:$0xff]
        %v1660 = vld [vmem:[#allocation8 + $0x20] sm:$0xff]
        %v1661 = vld [vmem:[#allocation8 + $0x28] sm:$0xff]
        %v1662 = vld [vmem:[#allocation8 + $0x30] sm:$0xff]
        %v1663 = vld [vmem:[#allocation8 + $0x38] sm:$0xff]
        %v1664 = vld [vmem:[#allocation8 + $0x40] sm:$0xff]
        %v1665 = vld [vmem:[#allocation8 + $0x48] sm:$0xff]
        %v1666 = vld [vmem:[#allocation8 + $0x50] sm:$0xff]
        %v1667 = vld [vmem:[#allocation8 + $0x58] sm:$0xff]
        %v1668 = vld [vmem:[#allocation8 + $0x60] sm:$0xff]
        %v1669 = vld [vmem:[#allocation8 + $0x68] sm:$0xff]
        %v1670 = vld [vmem:[#allocation8 + $0x70] sm:$0xff]
        %v1671 = vld [vmem:[#allocation8 + $0x78] sm:$0xff]
        %v1672 = vld [vmem:[#allocation8 + $0x80] sm:$0xff]
        %v1673 = vld [vmem:[#allocation8 + $0x88] sm:$0xff]
        %v1674 = vld [vmem:[#allocation8 + $0x90] sm:$0xff]
        %v1675 = vld [vmem:[#allocation8 + $0x98] sm:$0xff]
        %v1676 = vld [vmem:[#allocation8 + $0xa0] sm:$0xff]
        %v1677 = vld [vmem:[#allocation8 + $0xa8] sm:$0xff]
        %v1678 = vld [vmem:[#allocation8 + $0xb0] sm:$0xff]
        %v1679 = vld [vmem:[#allocation8 + $0xb8] sm:$0xff]
        %v1680 = vld [vmem:[#allocation8 + $0xc0] sm:$0xff]
        %v1681 = vld [vmem:[#allocation8 + $0xc8] sm:$0xff]
        %v1682 = vld [vmem:[#allocation8 + $0xd0] sm:$0xff]
        %v1683 = vld [vmem:[#allocation8 + $0xd8] sm:$0xff]
        %v1684 = vld [vmem:[#allocation8 + $0xe0] sm:$0xff]
        %v1685 = vld [vmem:[#allocation8 + $0xe8] sm:$0xff]
        %v1686 = vld [vmem:[#allocation8 + $0xf0] sm:$0xff]
        %v1687 = vld [vmem:[#allocation8 + $0xf8] sm:$0xff]
        %1688 = vxpose.xlu0.b32.start [1/16] %v1624, 128
        %1689 = vxpose.xlu0.b32.cont [2/16] %v1625, 128
        %1690 = vxpose.xlu0.b32.cont [3/16] %v1626, 128
        %1691 = vxpose.xlu0.b32.cont [4/16] %v1627, 128
        %1692 = vxpose.xlu0.b32.cont [5/16] %v1628, 128
        %1693 = vxpose.xlu0.b32.cont [6/16] %v1629, 128
        %1694 = vxpose.xlu0.b32.cont [7/16] %v1630, 128
        %1695 = vxpose.xlu0.b32.cont [8/16] %v1631, 128
        %1696 = vxpose.xlu0.b32.cont [9/16] %v1632, 128
        %1697 = vxpose.xlu0.b32.cont [10/16] %v1633, 128
        %1698 = vxpose.xlu0.b32.cont [11/16] %v1634, 128
        %1699 = vxpose.xlu0.b32.cont [12/16] %v1635, 128
        %1700 = vxpose.xlu0.b32.cont [13/16] %v1636, 128
        %1701 = vxpose.xlu0.b32.cont [14/16] %v1637, 128
        %1702 = vxpose.xlu0.b32.cont [15/16] %v1638, 128
        %1703 = vxpose.xlu0.b32.end [16/16] %v1639, 128
        %v1704 = vpop.trf.xlu0
        %v1705 = vpop.trf.xlu0
        %v1706 = vpop.trf.xlu0
        %v1707 = vpop.trf.xlu0
        %v1708 = vpop.trf.xlu0
        %v1709 = vpop.trf.xlu0
        %v1710 = vpop.trf.xlu0
        %v1711 = vpop.trf.xlu0
        %v1712 = vpop.trf.xlu0
        %v1713 = vpop.trf.xlu0
        %v1714 = vpop.trf.xlu0
        %v1715 = vpop.trf.xlu0
        %v1716 = vpop.trf.xlu0
        %v1717 = vpop.trf.xlu0
        %v1718 = vpop.trf.xlu0
        %v1719 = vpop.trf.xlu0
        %1720 = vxpose.xlu0.b32.start [1/16] %v1640, 128
        %1721 = vxpose.xlu0.b32.cont [2/16] %v1641, 128
        %1722 = vxpose.xlu0.b32.cont [3/16] %v1642, 128
        %1723 = vxpose.xlu0.b32.cont [4/16] %v1643, 128
        %1724 = vxpose.xlu0.b32.cont [5/16] %v1644, 128
        %1725 = vxpose.xlu0.b32.cont [6/16] %v1645, 128
        %1726 = vxpose.xlu0.b32.cont [7/16] %v1646, 128
        %1727 = vxpose.xlu0.b32.cont [8/16] %v1647, 128
        %1728 = vxpose.xlu0.b32.cont [9/16] %v1648, 128
        %1729 = vxpose.xlu0.b32.cont [10/16] %v1649, 128
        %1730 = vxpose.xlu0.b32.cont [11/16] %v1650, 128
        %1731 = vxpose.xlu0.b32.cont [12/16] %v1651, 128
        %1732 = vxpose.xlu0.b32.cont [13/16] %v1652, 128
        %1733 = vxpose.xlu0.b32.cont [14/16] %v1653, 128
        %1734 = vxpose.xlu0.b32.cont [15/16] %v1654, 128
        %1735 = vxpose.xlu0.b32.end [16/16] %v1655, 128
        %v1736 = vpop.trf.xlu0
        %v1737 = vpop.trf.xlu0
        %v1738 = vpop.trf.xlu0
        %v1739 = vpop.trf.xlu0
        %v1740 = vpop.trf.xlu0
        %v1741 = vpop.trf.xlu0
        %v1742 = vpop.trf.xlu0
        %v1743 = vpop.trf.xlu0
        %v1744 = vpop.trf.xlu0
        %v1745 = vpop.trf.xlu0
        %v1746 = vpop.trf.xlu0
        %v1747 = vpop.trf.xlu0
        %v1748 = vpop.trf.xlu0
        %v1749 = vpop.trf.xlu0
        %v1750 = vpop.trf.xlu0
        %v1751 = vpop.trf.xlu0
        %1752 = vmatpush.msra.mxu0 %v1671
        %1753 = vmatpush.msra.mxu0 %v1670
        %1754 = vmatpush.msra.mxu0 %v1669
        %1755 = vmatpush.msra.mxu0 %v1668
        %1756 = vmatpush.msra.mxu0 %v1667
        %1757 = vmatpush.msra.mxu0 %v1666
        %1758 = vmatpush.msra.mxu0 %v1665
        %1759 = vmatpush.msra.mxu0 %v1664
        %1760 = vmatpush.msra.mxu0 %v1663
        %1761 = vmatpush.msra.mxu0 %v1662
        %1762 = vmatpush.msra.mxu0 %v1661
        %1763 = vmatpush.msra.mxu0 %v1660
        %1764 = vmatpush.msra.mxu0 %v1659
        %1765 = vmatpush.msra.mxu0 %v1658
        %1766 = vmatpush.msra.mxu0 %v1657
        %1767 = vmatpush.msra.mxu0 %v1656
        %1768 = vmatmul.f32.gmra.mxu0 %v1704
        %v1769 = vpop.f32.mrf.mxu0
        %v1770 = vadd.f32 0.0, %v1769
        %1771 = vmatmul.f32.gmra.mxu0 %v1705
        %v1772 = vpop.f32.mrf.mxu0
        %v1773 = vadd.f32 0.0, %v1772
        %1774 = vmatmul.f32.gmra.mxu0 %v1706
        %v1775 = vpop.f32.mrf.mxu0
        %v1776 = vadd.f32 0.0, %v1775
        %1777 = vmatmul.f32.gmra.mxu0 %v1707
        %v1778 = vpop.f32.mrf.mxu0
        %v1779 = vadd.f32 0.0, %v1778
        %1780 = vmatmul.f32.gmra.mxu0 %v1708
        %v1781 = vpop.f32.mrf.mxu0
        %v1782 = vadd.f32 0.0, %v1781
        %1783 = vmatmul.f32.gmra.mxu0 %v1709
        %v1784 = vpop.f32.mrf.mxu0
        %v1785 = vadd.f32 0.0, %v1784
        %1786 = vmatmul.f32.gmra.mxu0 %v1710
        %v1787 = vpop.f32.mrf.mxu0
        %v1788 = vadd.f32 0.0, %v1787
        %1789 = vmatmul.f32.gmra.mxu0 %v1711
        %v1790 = vpop.f32.mrf.mxu0
        %v1791 = vadd.f32 0.0, %v1790
        %1792 = vmatmul.f32.gmra.mxu0 %v1712
        %v1793 = vpop.f32.mrf.mxu0
        %v1794 = vadd.f32 0.0, %v1793
        %1795 = vmatmul.f32.gmra.mxu0 %v1713
        %v1796 = vpop.f32.mrf.mxu0
        %v1797 = vadd.f32 0.0, %v1796
        %1798 = vmatmul.f32.gmra.mxu0 %v1714
        %v1799 = vpop.f32.mrf.mxu0
        %v1800 = vadd.f32 0.0, %v1799
        %1801 = vmatmul.f32.gmra.mxu0 %v1715
        %v1802 = vpop.f32.mrf.mxu0
        %v1803 = vadd.f32 0.0, %v1802
        %1804 = vmatmul.f32.gmra.mxu0 %v1716
        %v1805 = vpop.f32.mrf.mxu0
        %v1806 = vadd.f32 0.0, %v1805
        %1807 = vmatmul.f32.gmra.mxu0 %v1717
        %v1808 = vpop.f32.mrf.mxu0
        %v1809 = vadd.f32 0.0, %v1808
        %1810 = vmatmul.f32.gmra.mxu0 %v1718
        %v1811 = vpop.f32.mrf.mxu0
        %v1812 = vadd.f32 0.0, %v1811
        %1813 = vmatmul.f32.gmra.mxu0 %v1719
        %v1814 = vpop.f32.mrf.mxu0
        %v1815 = vadd.f32 0.0, %v1814
        %1816 = vdwg.mxu0
        %1817 = vmatpush.msra.mxu0 %v1687
        %1818 = vmatpush.msra.mxu0 %v1686
        %1819 = vmatpush.msra.mxu0 %v1685
        %1820 = vmatpush.msra.mxu0 %v1684
        %1821 = vmatpush.msra.mxu0 %v1683
        %1822 = vmatpush.msra.mxu0 %v1682
        %1823 = vmatpush.msra.mxu0 %v1681
        %1824 = vmatpush.msra.mxu0 %v1680
        %1825 = vmatpush.msra.mxu0 %v1679
        %1826 = vmatpush.msra.mxu0 %v1678
        %1827 = vmatpush.msra.mxu0 %v1677
        %1828 = vmatpush.msra.mxu0 %v1676
        %1829 = vmatpush.msra.mxu0 %v1675
        %1830 = vmatpush.msra.mxu0 %v1674
        %1831 = vmatpush.msra.mxu0 %v1673
        %1832 = vmatpush.msra.mxu0 %v1672
        %1833 = vmatmul.f32.gmra.mxu0 %v1736
        %v1834 = vpop.f32.mrf.mxu0
        %v1835 = vadd.f32 %v1770, %v1834
        %1836 = vmatmul.f32.gmra.mxu0 %v1737
        %v1837 = vpop.f32.mrf.mxu0
        %v1838 = vadd.f32 %v1773, %v1837
        %1839 = vmatmul.f32.gmra.mxu0 %v1738
        %v1840 = vpop.f32.mrf.mxu0
        %v1841 = vadd.f32 %v1776, %v1840
        %1842 = vmatmul.f32.gmra.mxu0 %v1739
        %v1843 = vpop.f32.mrf.mxu0
        %v1844 = vadd.f32 %v1779, %v1843
        %1845 = vmatmul.f32.gmra.mxu0 %v1740
        %v1846 = vpop.f32.mrf.mxu0
        %v1847 = vadd.f32 %v1782, %v1846
        %1848 = vmatmul.f32.gmra.mxu0 %v1741
        %v1849 = vpop.f32.mrf.mxu0
        %v1850 = vadd.f32 %v1785, %v1849
        %1851 = vmatmul.f32.gmra.mxu0 %v1742
        %v1852 = vpop.f32.mrf.mxu0
        %v1853 = vadd.f32 %v1788, %v1852
        %1854 = vmatmul.f32.gmra.mxu0 %v1743
        %v1855 = vpop.f32.mrf.mxu0
        %v1856 = vadd.f32 %v1791, %v1855
        %1857 = vmatmul.f32.gmra.mxu0 %v1744
        %v1858 = vpop.f32.mrf.mxu0
        %v1859 = vadd.f32 %v1794, %v1858
        %1860 = vmatmul.f32.gmra.mxu0 %v1745
        %v1861 = vpop.f32.mrf.mxu0
        %v1862 = vadd.f32 %v1797, %v1861
        %1863 = vmatmul.f32.gmra.mxu0 %v1746
        %v1864 = vpop.f32.mrf.mxu0
        %v1865 = vadd.f32 %v1800, %v1864
        %1866 = vmatmul.f32.gmra.mxu0 %v1747
        %v1867 = vpop.f32.mrf.mxu0
        %v1868 = vadd.f32 %v1803, %v1867
        %1869 = vmatmul.f32.gmra.mxu0 %v1748
        %v1870 = vpop.f32.mrf.mxu0
        %v1871 = vadd.f32 %v1806, %v1870
        %1872 = vmatmul.f32.gmra.mxu0 %v1749
        %v1873 = vpop.f32.mrf.mxu0
        %v1874 = vadd.f32 %v1809, %v1873
        %1875 = vmatmul.f32.gmra.mxu0 %v1750
        %v1876 = vpop.f32.mrf.mxu0
        %v1877 = vadd.f32 %v1812, %v1876
        %1878 = vmatmul.f32.gmra.mxu0 %v1751
        %v1879 = vpop.f32.mrf.mxu0
        %v1880 = vadd.f32 %v1815, %v1879
        %1881 = vdwg.mxu0
        %v1882 = vld [vmem:[%s653] sm:$0xff]
        %v1883 = vld [vmem:[%s653 + $0x8] sm:$0xff]
        %v1884 = vld [vmem:[%s653 + $0x10] sm:$0xff]
        %v1885 = vld [vmem:[%s653 + $0x18] sm:$0xff]
        %v1886 = vld [vmem:[%s653 + $0x20] sm:$0xff]
        %v1887 = vld [vmem:[%s653 + $0x28] sm:$0xff]
        %v1888 = vld [vmem:[%s653 + $0x30] sm:$0xff]
        %v1889 = vld [vmem:[%s653 + $0x38] sm:$0xff]
        %v1890 = vld [vmem:[%s653 + $0x40] sm:$0xff]
        %v1891 = vld [vmem:[%s653 + $0x48] sm:$0xff]
        %v1892 = vld [vmem:[%s653 + $0x50] sm:$0xff]
        %v1893 = vld [vmem:[%s653 + $0x58] sm:$0xff]
        %v1894 = vld [vmem:[%s653 + $0x60] sm:$0xff]
        %v1895 = vld [vmem:[%s653 + $0x68] sm:$0xff]
        %v1896 = vld [vmem:[%s653 + $0x70] sm:$0xff]
        %v1897 = vld [vmem:[%s653 + $0x78] sm:$0xff]
        %v1898 = vld [vmem:[%s754] sm:$0x1]
        %v1900 = vperm.slane %v1898, 0
        %1902 = vmatpush.msra.mxu0 %v1897
        %1903 = vmatpush.msra.mxu0 %v1896
        %1904 = vmatpush.msra.mxu0 %v1895
        %1905 = vmatpush.msra.mxu0 %v1894
        %1906 = vmatpush.msra.mxu0 %v1893
        %1907 = vmatpush.msra.mxu0 %v1892
        %1908 = vmatpush.msra.mxu0 %v1891
        %1909 = vmatpush.msra.mxu0 %v1890
        %1910 = vmatpush.msra.mxu0 %v1889
        %1911 = vmatpush.msra.mxu0 %v1888
        %1912 = vmatpush.msra.mxu0 %v1887
        %1913 = vmatpush.msra.mxu0 %v1886
        %1914 = vmatpush.msra.mxu0 %v1885
        %1915 = vmatpush.msra.mxu0 %v1884
        %1916 = vmatpush.msra.mxu0 %v1883
        %1917 = vmatpush.msra.mxu0 %v1882
        %1918 = vmatmul.f32.gmra.mxu0 %v794
        %v1919 = vpop.f32.mrf.mxu0
        %v1920 = vadd.f32 %v1900, %v1919
        %1921 = vmatmul.f32.gmra.mxu0 %v795
        %v1922 = vpop.f32.mrf.mxu0
        %v1923 = vadd.f32 %v1900, %v1922
        %1924 = vmatmul.f32.gmra.mxu0 %v796
        %v1925 = vpop.f32.mrf.mxu0
        %v1926 = vadd.f32 %v1900, %v1925
        %1927 = vmatmul.f32.gmra.mxu0 %v797
        %v1928 = vpop.f32.mrf.mxu0
        %v1929 = vadd.f32 %v1900, %v1928
        %1930 = vmatmul.f32.gmra.mxu0 %v798
        %v1931 = vpop.f32.mrf.mxu0
        %v1932 = vadd.f32 %v1900, %v1931
        %1933 = vmatmul.f32.gmra.mxu0 %v799
        %v1934 = vpop.f32.mrf.mxu0
        %v1935 = vadd.f32 %v1900, %v1934
        %1936 = vmatmul.f32.gmra.mxu0 %v800
        %v1937 = vpop.f32.mrf.mxu0
        %v1938 = vadd.f32 %v1900, %v1937
        %1939 = vmatmul.f32.gmra.mxu0 %v801
        %v1940 = vpop.f32.mrf.mxu0
        %v1941 = vadd.f32 %v1900, %v1940
        %1942 = vmatmul.f32.gmra.mxu0 %v802
        %v1943 = vpop.f32.mrf.mxu0
        %v1944 = vadd.f32 %v1900, %v1943
        %1945 = vmatmul.f32.gmra.mxu0 %v803
        %v1946 = vpop.f32.mrf.mxu0
        %v1947 = vadd.f32 %v1900, %v1946
        %1948 = vmatmul.f32.gmra.mxu0 %v804
        %v1949 = vpop.f32.mrf.mxu0
        %v1950 = vadd.f32 %v1900, %v1949
        %1951 = vmatmul.f32.gmra.mxu0 %v805
        %v1952 = vpop.f32.mrf.mxu0
        %v1953 = vadd.f32 %v1900, %v1952
        %1954 = vmatmul.f32.gmra.mxu0 %v806
        %v1955 = vpop.f32.mrf.mxu0
        %v1956 = vadd.f32 %v1900, %v1955
        %1957 = vmatmul.f32.gmra.mxu0 %v807
        %v1958 = vpop.f32.mrf.mxu0
        %v1959 = vadd.f32 %v1900, %v1958
        %1960 = vmatmul.f32.gmra.mxu0 %v808
        %v1961 = vpop.f32.mrf.mxu0
        %v1962 = vadd.f32 %v1900, %v1961
        %1963 = vmatmul.f32.gmra.mxu0 %v809
        %v1964 = vpop.f32.mrf.mxu0
        %v1965 = vadd.f32 %v1900, %v1964
        %1966 = vdwg.mxu0
        %v1967 = vmul.f32 %v1920, %v1920
        %v1968 = vmul.f32 %v1923, %v1923
        %v1969 = vmul.f32 %v1926, %v1926
        %v1970 = vmul.f32 %v1929, %v1929
        %v1971 = vmul.f32 %v1932, %v1932
        %v1972 = vmul.f32 %v1935, %v1935
        %v1973 = vmul.f32 %v1938, %v1938
        %v1974 = vmul.f32 %v1941, %v1941
        %v1975 = vmul.f32 %v1944, %v1944
        %v1976 = vmul.f32 %v1947, %v1947
        %v1977 = vmul.f32 %v1950, %v1950
        %v1978 = vmul.f32 %v1953, %v1953
        %v1979 = vmul.f32 %v1956, %v1956
        %v1980 = vmul.f32 %v1959, %v1959
        %v1981 = vmul.f32 %v1962, %v1962
        %v1982 = vmul.f32 %v1965, %v1965
        %1983 = vadd.xlane.f32.xlu0 %v1967
        %v1984 = vpop.xlane.xlu0 %1983
        %1985 = vadd.xlane.f32.xlu0 %v1968
        %v1986 = vpop.xlane.xlu0 %1985
        %1987 = vadd.xlane.f32.xlu0 %v1969
        %v1988 = vpop.xlane.xlu0 %1987
        %1989 = vadd.xlane.f32.xlu0 %v1970
        %v1990 = vpop.xlane.xlu0 %1989
        %1991 = vadd.xlane.f32.xlu0 %v1971
        %v1992 = vpop.xlane.xlu0 %1991
        %1993 = vadd.xlane.f32.xlu0 %v1972
        %v1994 = vpop.xlane.xlu0 %1993
        %1995 = vadd.xlane.f32.xlu0 %v1973
        %v1996 = vpop.xlane.xlu0 %1995
        %1997 = vadd.xlane.f32.xlu0 %v1974
        %v1998 = vpop.xlane.xlu0 %1997
        %1999 = vadd.xlane.f32.xlu0 %v1975
        %v2000 = vpop.xlane.xlu0 %1999
        %2001 = vadd.xlane.f32.xlu0 %v1976
        %v2002 = vpop.xlane.xlu0 %2001
        %2003 = vadd.xlane.f32.xlu0 %v1977
        %v2004 = vpop.xlane.xlu0 %2003
        %2005 = vadd.xlane.f32.xlu0 %v1978
        %v2006 = vpop.xlane.xlu0 %2005
        %2007 = vadd.xlane.f32.xlu0 %v1979
        %v2008 = vpop.xlane.xlu0 %2007
        %2009 = vadd.xlane.f32.xlu0 %v1980
        %v2010 = vpop.xlane.xlu0 %2009
        %2011 = vadd.xlane.f32.xlu0 %v1981
        %v2012 = vpop.xlane.xlu0 %2011
        %2013 = vadd.xlane.f32.xlu0 %v1982
        %v2014 = vpop.xlane.xlu0 %2013
        %v2015 = vmax.f32 %v1984, 1e-24
        %v2016 = vmax.f32 %v1986, 1e-24
        %v2017 = vmax.f32 %v1988, 1e-24
        %v2018 = vmax.f32 %v1990, 1e-24
        %v2019 = vmax.f32 %v1992, 1e-24
        %v2020 = vmax.f32 %v1994, 1e-24
        %v2021 = vmax.f32 %v1996, 1e-24
        %v2022 = vmax.f32 %v1998, 1e-24
        %v2023 = vmax.f32 %v2000, 1e-24
        %v2024 = vmax.f32 %v2002, 1e-24
        %v2025 = vmax.f32 %v2004, 1e-24
        %v2026 = vmax.f32 %v2006, 1e-24
        %v2027 = vmax.f32 %v2008, 1e-24
        %v2028 = vmax.f32 %v2010, 1e-24
        %v2029 = vmax.f32 %v2012, 1e-24
        %v2030 = vmax.f32 %v2014, 1e-24
        %v2031 = vrsqrt.pop %v2015
        %v2032 = vmul.f32 %v2031, %v2015
        %v2033 = vmul.f32 %v2032, %v2031
        %v2034 = vmul.f32 0.5, %v2033
        %v2035 = vsub.f32 1.5, %v2034
        %v2036 = vmul.f32 %v2031, %v2035
        %vm2037 = vweird.f32 %v2015
        %vm2038 = vweird.f32 %v2031
        %vm2039 = vmor %vm2037, %vm2038
        %v2040 = vsel %vm2039, %v2031, %v2036
        %v2041 = vrsqrt.pop %v2016
        %v2042 = vmul.f32 %v2041, %v2016
        %v2043 = vmul.f32 %v2042, %v2041
        %v2044 = vmul.f32 0.5, %v2043
        %v2045 = vsub.f32 1.5, %v2044
        %v2046 = vmul.f32 %v2041, %v2045
        %vm2047 = vweird.f32 %v2016
        %vm2048 = vweird.f32 %v2041
        %vm2049 = vmor %vm2047, %vm2048
        %v2050 = vsel %vm2049, %v2041, %v2046
        %v2051 = vrsqrt.pop %v2017
        %v2052 = vmul.f32 %v2051, %v2017
        %v2053 = vmul.f32 %v2052, %v2051
        %v2054 = vmul.f32 0.5, %v2053
        %v2055 = vsub.f32 1.5, %v2054
        %v2056 = vmul.f32 %v2051, %v2055
        %vm2057 = vweird.f32 %v2017
        %vm2058 = vweird.f32 %v2051
        %vm2059 = vmor %vm2057, %vm2058
        %v2060 = vsel %vm2059, %v2051, %v2056
        %v2061 = vrsqrt.pop %v2018
        %v2062 = vmul.f32 %v2061, %v2018
        %v2063 = vmul.f32 %v2062, %v2061
        %v2064 = vmul.f32 0.5, %v2063
        %v2065 = vsub.f32 1.5, %v2064
        %v2066 = vmul.f32 %v2061, %v2065
        %vm2067 = vweird.f32 %v2018
        %vm2068 = vweird.f32 %v2061
        %vm2069 = vmor %vm2067, %vm2068
        %v2070 = vsel %vm2069, %v2061, %v2066
        %v2071 = vrsqrt.pop %v2019
        %v2072 = vmul.f32 %v2071, %v2019
        %v2073 = vmul.f32 %v2072, %v2071
        %v2074 = vmul.f32 0.5, %v2073
        %v2075 = vsub.f32 1.5, %v2074
        %v2076 = vmul.f32 %v2071, %v2075
        %vm2077 = vweird.f32 %v2019
        %vm2078 = vweird.f32 %v2071
        %vm2079 = vmor %vm2077, %vm2078
        %v2080 = vsel %vm2079, %v2071, %v2076
        %v2081 = vrsqrt.pop %v2020
        %v2082 = vmul.f32 %v2081, %v2020
        %v2083 = vmul.f32 %v2082, %v2081
        %v2084 = vmul.f32 0.5, %v2083
        %v2085 = vsub.f32 1.5, %v2084
        %v2086 = vmul.f32 %v2081, %v2085
        %vm2087 = vweird.f32 %v2020
        %vm2088 = vweird.f32 %v2081
        %vm2089 = vmor %vm2087, %vm2088
        %v2090 = vsel %vm2089, %v2081, %v2086
        %v2091 = vrsqrt.pop %v2021
        %v2092 = vmul.f32 %v2091, %v2021
        %v2093 = vmul.f32 %v2092, %v2091
        %v2094 = vmul.f32 0.5, %v2093
        %v2095 = vsub.f32 1.5, %v2094
        %v2096 = vmul.f32 %v2091, %v2095
        %vm2097 = vweird.f32 %v2021
        %vm2098 = vweird.f32 %v2091
        %vm2099 = vmor %vm2097, %vm2098
        %v2100 = vsel %vm2099, %v2091, %v2096
        %v2101 = vrsqrt.pop %v2022
        %v2102 = vmul.f32 %v2101, %v2022
        %v2103 = vmul.f32 %v2102, %v2101
        %v2104 = vmul.f32 0.5, %v2103
        %v2105 = vsub.f32 1.5, %v2104
        %v2106 = vmul.f32 %v2101, %v2105
        %vm2107 = vweird.f32 %v2022
        %vm2108 = vweird.f32 %v2101
        %vm2109 = vmor %vm2107, %vm2108
        %v2110 = vsel %vm2109, %v2101, %v2106
        %v2111 = vrsqrt.pop %v2023
        %v2112 = vmul.f32 %v2111, %v2023
        %v2113 = vmul.f32 %v2112, %v2111
        %v2114 = vmul.f32 0.5, %v2113
        %v2115 = vsub.f32 1.5, %v2114
        %v2116 = vmul.f32 %v2111, %v2115
        %vm2117 = vweird.f32 %v2023
        %vm2118 = vweird.f32 %v2111
        %vm2119 = vmor %vm2117, %vm2118
        %v2120 = vsel %vm2119, %v2111, %v2116
        %v2121 = vrsqrt.pop %v2024
        %v2122 = vmul.f32 %v2121, %v2024
        %v2123 = vmul.f32 %v2122, %v2121
        %v2124 = vmul.f32 0.5, %v2123
        %v2125 = vsub.f32 1.5, %v2124
        %v2126 = vmul.f32 %v2121, %v2125
        %vm2127 = vweird.f32 %v2024
        %vm2128 = vweird.f32 %v2121
        %vm2129 = vmor %vm2127, %vm2128
        %v2130 = vsel %vm2129, %v2121, %v2126
        %v2131 = vrsqrt.pop %v2025
        %v2132 = vmul.f32 %v2131, %v2025
        %v2133 = vmul.f32 %v2132, %v2131
        %v2134 = vmul.f32 0.5, %v2133
        %v2135 = vsub.f32 1.5, %v2134
        %v2136 = vmul.f32 %v2131, %v2135
        %vm2137 = vweird.f32 %v2025
        %vm2138 = vweird.f32 %v2131
        %vm2139 = vmor %vm2137, %vm2138
        %v2140 = vsel %vm2139, %v2131, %v2136
        %v2141 = vrsqrt.pop %v2026
        %v2142 = vmul.f32 %v2141, %v2026
        %v2143 = vmul.f32 %v2142, %v2141
        %v2144 = vmul.f32 0.5, %v2143
        %v2145 = vsub.f32 1.5, %v2144
        %v2146 = vmul.f32 %v2141, %v2145
        %vm2147 = vweird.f32 %v2026
        %vm2148 = vweird.f32 %v2141
        %vm2149 = vmor %vm2147, %vm2148
        %v2150 = vsel %vm2149, %v2141, %v2146
        %v2151 = vrsqrt.pop %v2027
        %v2152 = vmul.f32 %v2151, %v2027
        %v2153 = vmul.f32 %v2152, %v2151
        %v2154 = vmul.f32 0.5, %v2153
        %v2155 = vsub.f32 1.5, %v2154
        %v2156 = vmul.f32 %v2151, %v2155
        %vm2157 = vweird.f32 %v2027
        %vm2158 = vweird.f32 %v2151
        %vm2159 = vmor %vm2157, %vm2158
        %v2160 = vsel %vm2159, %v2151, %v2156
        %v2161 = vrsqrt.pop %v2028
        %v2162 = vmul.f32 %v2161, %v2028
        %v2163 = vmul.f32 %v2162, %v2161
        %v2164 = vmul.f32 0.5, %v2163
        %v2165 = vsub.f32 1.5, %v2164
        %v2166 = vmul.f32 %v2161, %v2165
        %vm2167 = vweird.f32 %v2028
        %vm2168 = vweird.f32 %v2161
        %vm2169 = vmor %vm2167, %vm2168
        %v2170 = vsel %vm2169, %v2161, %v2166
        %v2171 = vrsqrt.pop %v2029
        %v2172 = vmul.f32 %v2171, %v2029
        %v2173 = vmul.f32 %v2172, %v2171
        %v2174 = vmul.f32 0.5, %v2173
        %v2175 = vsub.f32 1.5, %v2174
        %v2176 = vmul.f32 %v2171, %v2175
        %vm2177 = vweird.f32 %v2029
        %vm2178 = vweird.f32 %v2171
        %vm2179 = vmor %vm2177, %vm2178
        %v2180 = vsel %vm2179, %v2171, %v2176
        %v2181 = vrsqrt.pop %v2030
        %v2182 = vmul.f32 %v2181, %v2030
        %v2183 = vmul.f32 %v2182, %v2181
        %v2184 = vmul.f32 0.5, %v2183
        %v2185 = vsub.f32 1.5, %v2184
        %v2186 = vmul.f32 %v2181, %v2185
        %vm2187 = vweird.f32 %v2030
        %vm2188 = vweird.f32 %v2181
        %vm2189 = vmor %vm2187, %vm2188
        %v2190 = vsel %vm2189, %v2181, %v2186
        %v2191 = vmul.f32 %v1920, %v2040
        %v2192 = vmul.f32 %v1923, %v2050
        %v2193 = vmul.f32 %v1926, %v2060
        %v2194 = vmul.f32 %v1929, %v2070
        %v2195 = vmul.f32 %v1932, %v2080
        %v2196 = vmul.f32 %v1935, %v2090
        %v2197 = vmul.f32 %v1938, %v2100
        %v2198 = vmul.f32 %v1941, %v2110
        %v2199 = vmul.f32 %v1944, %v2120
        %v2200 = vmul.f32 %v1947, %v2130
        %v2201 = vmul.f32 %v1950, %v2140
        %v2202 = vmul.f32 %v1953, %v2150
        %v2203 = vmul.f32 %v1956, %v2160
        %v2204 = vmul.f32 %v1959, %v2170
        %v2205 = vmul.f32 %v1962, %v2180
        %v2206 = vmul.f32 %v1965, %v2190
        %v2207 = vld [vmem:[%s663] sm:$0xff]
        %v2208 = vld [vmem:[%s663 + $0x8] sm:$0xff]
        %v2209 = vld [vmem:[%s663 + $0x10] sm:$0xff]
        %v2210 = vld [vmem:[%s663 + $0x18] sm:$0xff]
        %v2211 = vld [vmem:[%s663 + $0x20] sm:$0xff]
        %v2212 = vld [vmem:[%s663 + $0x28] sm:$0xff]
        %v2213 = vld [vmem:[%s663 + $0x30] sm:$0xff]
        %v2214 = vld [vmem:[%s663 + $0x38] sm:$0xff]
        %v2215 = vld [vmem:[%s663 + $0x40] sm:$0xff]
        %v2216 = vld [vmem:[%s663 + $0x48] sm:$0xff]
        %v2217 = vld [vmem:[%s663 + $0x50] sm:$0xff]
        %v2218 = vld [vmem:[%s663 + $0x58] sm:$0xff]
        %v2219 = vld [vmem:[%s663 + $0x60] sm:$0xff]
        %v2220 = vld [vmem:[%s663 + $0x68] sm:$0xff]
        %v2221 = vld [vmem:[%s663 + $0x70] sm:$0xff]
        %v2222 = vld [vmem:[%s663 + $0x78] sm:$0xff]
        %v2223 = vld [vmem:[%s757] sm:$0x1]
        %v2225 = vperm.slane %v2223, 0
        %2227 = vmatpush.msra.mxu0 %v2222
        %2228 = vmatpush.msra.mxu0 %v2221
        %2229 = vmatpush.msra.mxu0 %v2220
        %2230 = vmatpush.msra.mxu0 %v2219
        %2231 = vmatpush.msra.mxu0 %v2218
        %2232 = vmatpush.msra.mxu0 %v2217
        %2233 = vmatpush.msra.mxu0 %v2216
        %2234 = vmatpush.msra.mxu0 %v2215
        %2235 = vmatpush.msra.mxu0 %v2214
        %2236 = vmatpush.msra.mxu0 %v2213
        %2237 = vmatpush.msra.mxu0 %v2212
        %2238 = vmatpush.msra.mxu0 %v2211
        %2239 = vmatpush.msra.mxu0 %v2210
        %2240 = vmatpush.msra.mxu0 %v2209
        %2241 = vmatpush.msra.mxu0 %v2208
        %2242 = vmatpush.msra.mxu0 %v2207
        %2243 = vmatmul.f32.gmra.mxu0 %v2191
        %v2244 = vpop.f32.mrf.mxu0
        %v2245 = vadd.f32 %v2225, %v2244
        %2246 = vmatmul.f32.gmra.mxu0 %v2192
        %v2247 = vpop.f32.mrf.mxu0
        %v2248 = vadd.f32 %v2225, %v2247
        %2249 = vmatmul.f32.gmra.mxu0 %v2193
        %v2250 = vpop.f32.mrf.mxu0
        %v2251 = vadd.f32 %v2225, %v2250
        %2252 = vmatmul.f32.gmra.mxu0 %v2194
        %v2253 = vpop.f32.mrf.mxu0
        %v2254 = vadd.f32 %v2225, %v2253
        %2255 = vmatmul.f32.gmra.mxu0 %v2195
        %v2256 = vpop.f32.mrf.mxu0
        %v2257 = vadd.f32 %v2225, %v2256
        %2258 = vmatmul.f32.gmra.mxu0 %v2196
        %v2259 = vpop.f32.mrf.mxu0
        %v2260 = vadd.f32 %v2225, %v2259
        %2261 = vmatmul.f32.gmra.mxu0 %v2197
        %v2262 = vpop.f32.mrf.mxu0
        %v2263 = vadd.f32 %v2225, %v2262
        %2264 = vmatmul.f32.gmra.mxu0 %v2198
        %v2265 = vpop.f32.mrf.mxu0
        %v2266 = vadd.f32 %v2225, %v2265
        %2267 = vmatmul.f32.gmra.mxu0 %v2199
        %v2268 = vpop.f32.mrf.mxu0
        %v2269 = vadd.f32 %v2225, %v2268
        %2270 = vmatmul.f32.gmra.mxu0 %v2200
        %v2271 = vpop.f32.mrf.mxu0
        %v2272 = vadd.f32 %v2225, %v2271
        %2273 = vmatmul.f32.gmra.mxu0 %v2201
        %v2274 = vpop.f32.mrf.mxu0
        %v2275 = vadd.f32 %v2225, %v2274
        %2276 = vmatmul.f32.gmra.mxu0 %v2202
        %v2277 = vpop.f32.mrf.mxu0
        %v2278 = vadd.f32 %v2225, %v2277
        %2279 = vmatmul.f32.gmra.mxu0 %v2203
        %v2280 = vpop.f32.mrf.mxu0
        %v2281 = vadd.f32 %v2225, %v2280
        %2282 = vmatmul.f32.gmra.mxu0 %v2204
        %v2283 = vpop.f32.mrf.mxu0
        %v2284 = vadd.f32 %v2225, %v2283
        %2285 = vmatmul.f32.gmra.mxu0 %v2205
        %v2286 = vpop.f32.mrf.mxu0
        %v2287 = vadd.f32 %v2225, %v2286
        %2288 = vmatmul.f32.gmra.mxu0 %v2206
        %v2289 = vpop.f32.mrf.mxu0
        %v2290 = vadd.f32 %v2225, %v2289
        %2291 = vdwg.mxu0
        %v2292 = vmul.f32 %v2245, 0.5
        %v2293 = vmul.f32 %v2248, 0.5
        %v2294 = vmul.f32 %v2251, 0.5
        %v2295 = vmul.f32 %v2254, 0.5
        %v2296 = vmul.f32 %v2257, 0.5
        %v2297 = vmul.f32 %v2260, 0.5
        %v2298 = vmul.f32 %v2263, 0.5
        %v2299 = vmul.f32 %v2266, 0.5
        %v2300 = vmul.f32 %v2269, 0.5
        %v2301 = vmul.f32 %v2272, 0.5
        %v2302 = vmul.f32 %v2275, 0.5
        %v2303 = vmul.f32 %v2278, 0.5
        %v2304 = vmul.f32 %v2281, 0.5
        %v2305 = vmul.f32 %v2284, 0.5
        %v2306 = vmul.f32 %v2287, 0.5
        %v2307 = vmul.f32 %v2290, 0.5
        %2308 = vmatpush.msra.mxu0 %v1499
        %2309 = vmatpush.msra.mxu0 %v1496
        %2310 = vmatpush.msra.mxu0 %v1493
        %2311 = vmatpush.msra.mxu0 %v1490
        %2312 = vmatpush.msra.mxu0 %v1487
        %2313 = vmatpush.msra.mxu0 %v1484
        %2314 = vmatpush.msra.mxu0 %v1481
        %2315 = vmatpush.msra.mxu0 %v1478
        %2316 = vmatpush.msra.mxu0 %v1475
        %2317 = vmatpush.msra.mxu0 %v1472
        %2318 = vmatpush.msra.mxu0 %v1469
        %2319 = vmatpush.msra.mxu0 %v1466
        %2320 = vmatpush.msra.mxu0 %v1463
        %2321 = vmatpush.msra.mxu0 %v1460
        %2322 = vmatpush.msra.mxu0 %v1457
        %2323 = vmatpush.msra.mxu0 %v1454
        %2324 = vmatmul.f32.gmra.mxu0 %v1384
        %v2325 = vpop.f32.mrf.mxu0
        %v2326 = vadd.f32 %v2292, %v2325
        %2327 = vmatmul.f32.gmra.mxu0 %v1385
        %v2328 = vpop.f32.mrf.mxu0
        %v2329 = vadd.f32 %v2293, %v2328
        %2330 = vmatmul.f32.gmra.mxu0 %v1386
        %v2331 = vpop.f32.mrf.mxu0
        %v2332 = vadd.f32 %v2294, %v2331
        %2333 = vmatmul.f32.gmra.mxu0 %v1387
        %v2334 = vpop.f32.mrf.mxu0
        %v2335 = vadd.f32 %v2295, %v2334
        %2336 = vmatmul.f32.gmra.mxu0 %v1388
        %v2337 = vpop.f32.mrf.mxu0
        %v2338 = vadd.f32 %v2296, %v2337
        %2339 = vmatmul.f32.gmra.mxu0 %v1389
        %v2340 = vpop.f32.mrf.mxu0
        %v2341 = vadd.f32 %v2297, %v2340
        %2342 = vmatmul.f32.gmra.mxu0 %v1390
        %v2343 = vpop.f32.mrf.mxu0
        %v2344 = vadd.f32 %v2298, %v2343
        %2345 = vmatmul.f32.gmra.mxu0 %v1391
        %v2346 = vpop.f32.mrf.mxu0
        %v2347 = vadd.f32 %v2299, %v2346
        %2348 = vmatmul.f32.gmra.mxu0 %v1392
        %v2349 = vpop.f32.mrf.mxu0
        %v2350 = vadd.f32 %v2300, %v2349
        %2351 = vmatmul.f32.gmra.mxu0 %v1393
        %v2352 = vpop.f32.mrf.mxu0
        %v2353 = vadd.f32 %v2301, %v2352
        %2354 = vmatmul.f32.gmra.mxu0 %v1394
        %v2355 = vpop.f32.mrf.mxu0
        %v2356 = vadd.f32 %v2302, %v2355
        %2357 = vmatmul.f32.gmra.mxu0 %v1395
        %v2358 = vpop.f32.mrf.mxu0
        %v2359 = vadd.f32 %v2303, %v2358
        %2360 = vmatmul.f32.gmra.mxu0 %v1396
        %v2361 = vpop.f32.mrf.mxu0
        %v2362 = vadd.f32 %v2304, %v2361
        %2363 = vmatmul.f32.gmra.mxu0 %v1397
        %v2364 = vpop.f32.mrf.mxu0
        %v2365 = vadd.f32 %v2305, %v2364
        %2366 = vmatmul.f32.gmra.mxu0 %v1398
        %v2367 = vpop.f32.mrf.mxu0
        %v2368 = vadd.f32 %v2306, %v2367
        %2369 = vmatmul.f32.gmra.mxu0 %v1399
        %v2370 = vpop.f32.mrf.mxu0
        %v2371 = vadd.f32 %v2307, %v2370
        %2372 = vdwg.mxu0
        %v2373 = vmul.f32 %v1835, 0.5
        %v2374 = vmul.f32 %v1838, 0.5
        %v2375 = vmul.f32 %v1841, 0.5
        %v2376 = vmul.f32 %v1844, 0.5
        %v2377 = vmul.f32 %v1847, 0.5
        %v2378 = vmul.f32 %v1850, 0.5
        %v2379 = vmul.f32 %v1853, 0.5
        %v2380 = vmul.f32 %v1856, 0.5
        %v2381 = vmul.f32 %v1859, 0.5
        %v2382 = vmul.f32 %v1862, 0.5
        %v2383 = vmul.f32 %v1865, 0.5
        %v2384 = vmul.f32 %v1868, 0.5
        %v2385 = vmul.f32 %v1871, 0.5
        %v2386 = vmul.f32 %v1874, 0.5
        %v2387 = vmul.f32 %v1877, 0.5
        %v2388 = vmul.f32 %v1880, 0.5
        %v2389 = vadd.f32 %v2326, %v2373
        %v2390 = vadd.f32 %v2329, %v2374
        %v2391 = vadd.f32 %v2332, %v2375
        %v2392 = vadd.f32 %v2335, %v2376
        %v2393 = vadd.f32 %v2338, %v2377
        %v2394 = vadd.f32 %v2341, %v2378
        %v2395 = vadd.f32 %v2344, %v2379
        %v2396 = vadd.f32 %v2347, %v2380
        %v2397 = vadd.f32 %v2350, %v2381
        %v2398 = vadd.f32 %v2353, %v2382
        %v2399 = vadd.f32 %v2356, %v2383
        %v2400 = vadd.f32 %v2359, %v2384
        %v2401 = vadd.f32 %v2362, %v2385
        %v2402 = vadd.f32 %v2365, %v2386
        %v2403 = vadd.f32 %v2368, %v2387
        %v2404 = vadd.f32 %v2371, %v2388
        %2405 = vst [vmem:[#allocation2] sm:$0xff] %v2389
        %2406 = vst [vmem:[#allocation2 + $0x8] sm:$0xff] %v2390
        %2407 = vst [vmem:[#allocation2 + $0x10] sm:$0xff] %v2391
        %2408 = vst [vmem:[#allocation2 + $0x18] sm:$0xff] %v2392
        %2409 = vst [vmem:[#allocation2 + $0x20] sm:$0xff] %v2393
        %2410 = vst [vmem:[#allocation2 + $0x28] sm:$0xff] %v2394
        %2411 = vst [vmem:[#allocation2 + $0x30] sm:$0xff] %v2395
        %2412 = vst [vmem:[#allocation2 + $0x38] sm:$0xff] %v2396
        %2413 = vst [vmem:[#allocation2 + $0x40] sm:$0xff] %v2397
        %2414 = vst [vmem:[#allocation2 + $0x48] sm:$0xff] %v2398
        %2415 = vst [vmem:[#allocation2 + $0x50] sm:$0xff] %v2399
        %2416 = vst [vmem:[#allocation2 + $0x58] sm:$0xff] %v2400
        %2417 = vst [vmem:[#allocation2 + $0x60] sm:$0xff] %v2401
        %2418 = vst [vmem:[#allocation2 + $0x68] sm:$0xff] %v2402
        %2419 = vst [vmem:[#allocation2 + $0x70] sm:$0xff] %v2403
        %2420 = vst [vmem:[#allocation2 + $0x78] sm:$0xff] %v2404
        %p2421 = scmp.eq.s32.totalorder %s37, 1
        // Predicated region
        $region113: #{tpu_custom_call.1} parent=75 // pred_check
          %p2422 = pneg %p2421
        $region114: #{tpu_custom_call.1} parent=75 // pred_check_branch
          %2424 = sbr.rel (%p2422) target = $region116
        $region115: #{tpu_custom_call.1} parent=75 // pred_region
          %2425 = vmax.xlane.f32.xlu0 %v2389
          %v2426 = vpop.xlane.xlu0 %2425
          %2427 = vmax.xlane.f32.xlu0 %v2390
          %v2428 = vpop.xlane.xlu0 %2427
          %2429 = vmax.xlane.f32.xlu0 %v2391
          %v2430 = vpop.xlane.xlu0 %2429
          %2431 = vmax.xlane.f32.xlu0 %v2392
          %v2432 = vpop.xlane.xlu0 %2431
          %2433 = vmax.xlane.f32.xlu0 %v2393
          %v2434 = vpop.xlane.xlu0 %2433
          %2435 = vmax.xlane.f32.xlu0 %v2394
          %v2436 = vpop.xlane.xlu0 %2435
          %2437 = vmax.xlane.f32.xlu0 %v2395
          %v2438 = vpop.xlane.xlu0 %2437
          %2439 = vmax.xlane.f32.xlu0 %v2396
          %v2440 = vpop.xlane.xlu0 %2439
          %2441 = vmax.xlane.f32.xlu0 %v2397
          %v2442 = vpop.xlane.xlu0 %2441
          %2443 = vmax.xlane.f32.xlu0 %v2398
          %v2444 = vpop.xlane.xlu0 %2443
          %2445 = vmax.xlane.f32.xlu0 %v2399
          %v2446 = vpop.xlane.xlu0 %2445
          %2447 = vmax.xlane.f32.xlu0 %v2400
          %v2448 = vpop.xlane.xlu0 %2447
          %2449 = vmax.xlane.f32.xlu0 %v2401
          %v2450 = vpop.xlane.xlu0 %2449
          %2451 = vmax.xlane.f32.xlu0 %v2402
          %v2452 = vpop.xlane.xlu0 %2451
          %2453 = vmax.xlane.f32.xlu0 %v2403
          %v2454 = vpop.xlane.xlu0 %2453
          %2455 = vmax.xlane.f32.xlu0 %v2404
          %v2456 = vpop.xlane.xlu0 %2455
          %v2457 = vsub.f32 %v2389, %v2426
          %v2458 = vsub.f32 %v2390, %v2428
          %v2459 = vsub.f32 %v2391, %v2430
          %v2460 = vsub.f32 %v2392, %v2432
          %v2461 = vsub.f32 %v2393, %v2434
          %v2462 = vsub.f32 %v2394, %v2436
          %v2463 = vsub.f32 %v2395, %v2438
          %v2464 = vsub.f32 %v2396, %v2440
          %v2465 = vsub.f32 %v2397, %v2442
          %v2466 = vsub.f32 %v2398, %v2444
          %v2467 = vsub.f32 %v2399, %v2446
          %v2468 = vsub.f32 %v2400, %v2448
          %v2469 = vsub.f32 %v2401, %v2450
          %v2470 = vsub.f32 %v2402, %v2452
          %v2471 = vsub.f32 %v2403, %v2454
          %v2472 = vsub.f32 %v2404, %v2456
          %v2473 = vmul.f32 %v2457, 1.442695
          %v2474 = vpow.pop %v2473
          %v2475 = vmul.f32 %v2458, 1.442695
          %v2476 = vpow.pop %v2475
          %v2477 = vmul.f32 %v2459, 1.442695
          %v2478 = vpow.pop %v2477
          %v2479 = vmul.f32 %v2460, 1.442695
          %v2480 = vpow.pop %v2479
          %v2481 = vmul.f32 %v2461, 1.442695
          %v2482 = vpow.pop %v2481
          %v2483 = vmul.f32 %v2462, 1.442695
          %v2484 = vpow.pop %v2483
          %v2485 = vmul.f32 %v2463, 1.442695
          %v2486 = vpow.pop %v2485
          %v2487 = vmul.f32 %v2464, 1.442695
          %v2488 = vpow.pop %v2487
          %v2489 = vmul.f32 %v2465, 1.442695
          %v2490 = vpow.pop %v2489
          %v2491 = vmul.f32 %v2466, 1.442695
          %v2492 = vpow.pop %v2491
          %v2493 = vmul.f32 %v2467, 1.442695
          %v2494 = vpow.pop %v2493
          %v2495 = vmul.f32 %v2468, 1.442695
          %v2496 = vpow.pop %v2495
          %v2497 = vmul.f32 %v2469, 1.442695
          %v2498 = vpow.pop %v2497
          %v2499 = vmul.f32 %v2470, 1.442695
          %v2500 = vpow.pop %v2499
          %v2501 = vmul.f32 %v2471, 1.442695
          %v2502 = vpow.pop %v2501
          %v2503 = vmul.f32 %v2472, 1.442695
          %v2504 = vpow.pop %v2503
          %2505 = vadd.xlane.f32.xlu0 %v2474
          %v2506 = vpop.xlane.xlu0 %2505
          %2507 = vadd.xlane.f32.xlu0 %v2476
          %v2508 = vpop.xlane.xlu0 %2507
          %2509 = vadd.xlane.f32.xlu0 %v2478
          %v2510 = vpop.xlane.xlu0 %2509
          %2511 = vadd.xlane.f32.xlu0 %v2480
          %v2512 = vpop.xlane.xlu0 %2511
          %2513 = vadd.xlane.f32.xlu0 %v2482
          %v2514 = vpop.xlane.xlu0 %2513
          %2515 = vadd.xlane.f32.xlu0 %v2484
          %v2516 = vpop.xlane.xlu0 %2515
          %2517 = vadd.xlane.f32.xlu0 %v2486
          %v2518 = vpop.xlane.xlu0 %2517
          %2519 = vadd.xlane.f32.xlu0 %v2488
          %v2520 = vpop.xlane.xlu0 %2519
          %2521 = vadd.xlane.f32.xlu0 %v2490
          %v2522 = vpop.xlane.xlu0 %2521
          %2523 = vadd.xlane.f32.xlu0 %v2492
          %v2524 = vpop.xlane.xlu0 %2523
          %2525 = vadd.xlane.f32.xlu0 %v2494
          %v2526 = vpop.xlane.xlu0 %2525
          %2527 = vadd.xlane.f32.xlu0 %v2496
          %v2528 = vpop.xlane.xlu0 %2527
          %2529 = vadd.xlane.f32.xlu0 %v2498
          %v2530 = vpop.xlane.xlu0 %2529
          %2531 = vadd.xlane.f32.xlu0 %v2500
          %v2532 = vpop.xlane.xlu0 %2531
          %2533 = vadd.xlane.f32.xlu0 %v2502
          %v2534 = vpop.xlane.xlu0 %2533
          %2535 = vadd.xlane.f32.xlu0 %v2504
          %v2536 = vpop.xlane.xlu0 %2535
          %v2537 = vlog2.pop %v2506
          %v2538 = vmul.f32 %v2537, 0.6931472
          %v2539 = vlog2.pop %v2508
          %v2540 = vmul.f32 %v2539, 0.6931472
          %v2541 = vlog2.pop %v2510
          %v2542 = vmul.f32 %v2541, 0.6931472
          %v2543 = vlog2.pop %v2512
          %v2544 = vmul.f32 %v2543, 0.6931472
          %v2545 = vlog2.pop %v2514
          %v2546 = vmul.f32 %v2545, 0.6931472
          %v2547 = vlog2.pop %v2516
          %v2548 = vmul.f32 %v2547, 0.6931472
          %v2549 = vlog2.pop %v2518
          %v2550 = vmul.f32 %v2549, 0.6931472
          %v2551 = vlog2.pop %v2520
          %v2552 = vmul.f32 %v2551, 0.6931472
          %v2553 = vlog2.pop %v2522
          %v2554 = vmul.f32 %v2553, 0.6931472
          %v2555 = vlog2.pop %v2524
          %v2556 = vmul.f32 %v2555, 0.6931472
          %v2557 = vlog2.pop %v2526
          %v2558 = vmul.f32 %v2557, 0.6931472
          %v2559 = vlog2.pop %v2528
          %v2560 = vmul.f32 %v2559, 0.6931472
          %v2561 = vlog2.pop %v2530
          %v2562 = vmul.f32 %v2561, 0.6931472
          %v2563 = vlog2.pop %v2532
          %v2564 = vmul.f32 %v2563, 0.6931472
          %v2565 = vlog2.pop %v2534
          %v2566 = vmul.f32 %v2565, 0.6931472
          %v2567 = vlog2.pop %v2536
          %v2568 = vmul.f32 %v2567, 0.6931472
          %v2569 = vsub.f32 %v2457, %v2538
          %v2570 = vsub.f32 %v2458, %v2540
          %v2571 = vsub.f32 %v2459, %v2542
          %v2572 = vsub.f32 %v2460, %v2544
          %v2573 = vsub.f32 %v2461, %v2546
          %v2574 = vsub.f32 %v2462, %v2548
          %v2575 = vsub.f32 %v2463, %v2550
          %v2576 = vsub.f32 %v2464, %v2552
          %v2577 = vsub.f32 %v2465, %v2554
          %v2578 = vsub.f32 %v2466, %v2556
          %v2579 = vsub.f32 %v2467, %v2558
          %v2580 = vsub.f32 %v2468, %v2560
          %v2581 = vsub.f32 %v2469, %v2562
          %v2582 = vsub.f32 %v2470, %v2564
          %v2583 = vsub.f32 %v2471, %v2566
          %v2584 = vsub.f32 %v2472, %v2568
          %2585 = vst [vmem:[#allocation17] sm:$0xff] %v2569
          %2586 = vst [vmem:[#allocation17 + $0x8] sm:$0xff] %v2570
          %2587 = vst [vmem:[#allocation17 + $0x10] sm:$0xff] %v2571
          %2588 = vst [vmem:[#allocation17 + $0x18] sm:$0xff] %v2572
          %2589 = vst [vmem:[#allocation17 + $0x20] sm:$0xff] %v2573
          %2590 = vst [vmem:[#allocation17 + $0x28] sm:$0xff] %v2574
          %2591 = vst [vmem:[#allocation17 + $0x30] sm:$0xff] %v2575
          %2592 = vst [vmem:[#allocation17 + $0x38] sm:$0xff] %v2576
          %2593 = vst [vmem:[#allocation17 + $0x40] sm:$0xff] %v2577
          %2594 = vst [vmem:[#allocation17 + $0x48] sm:$0xff] %v2578
          %2595 = vst [vmem:[#allocation17 + $0x50] sm:$0xff] %v2579
          %2596 = vst [vmem:[#allocation17 + $0x58] sm:$0xff] %v2580
          %2597 = vst [vmem:[#allocation17 + $0x60] sm:$0xff] %v2581
          %2598 = vst [vmem:[#allocation17 + $0x68] sm:$0xff] %v2582
          %2599 = vst [vmem:[#allocation17 + $0x70] sm:$0xff] %v2583
          %2600 = vst [vmem:[#allocation17 + $0x78] sm:$0xff] %v2584
        $region116: #{tpu_custom_call.1} parent=75 // pred_fallthru
          _
        // Predicated region
        $region117: #{tpu_custom_call.1} parent=75 // pred_check
          %p2601 = pneg %p399
        $region118: #{tpu_custom_call.1} parent=75 // pred_check_branch
          %2603 = sbr.rel (%p2601) target = $region120
        $region119: #{tpu_custom_call.1} parent=75 // pred_region
          %2605 = vsyncadd [#allocation5], 0
          %s2606 = sshll.u32 [#allocation17], 4
          %s2607 = int_to_ptr.vmem [resolvable:$true] %s2606
          %s2608 = sshll.u32 %s14, 4
          %s2609 = int_to_ptr.hbm [resolvable:$true] %s2608
          %2614 = dma.vmem_to_hbm [thread:$0]  %s2607, 2048, %s2609, [#allocation5], 128, 128, 8
        $region120: #{tpu_custom_call.1} parent=75 // pred_fallthru
          _
        // Predicated region
        $region121: #{tpu_custom_call.1} parent=75 // pred_check
          %p2615 = pneg %p399
        $region122: #{tpu_custom_call.1} parent=75 // pred_check_branch
          %2617 = sbr.rel (%p2615) target = $region124
        $region123: #{tpu_custom_call.1} parent=75 // pred_region
          %2619 = dma.done [#allocation5], 2048
        $region124: #{tpu_custom_call.1} parent=75 // pred_fallthru
          _
      $region76: #{tpu_custom_call.1} parent=5 // pred_fallthru
        _
      %p2620 = scmp.le.s32.totalorder 2, %s32
      // Predicated region
      $region125: #{tpu_custom_call.1} parent=5 // pred_check
        %p2621 = pneg %p2620
      $region126: #{tpu_custom_call.1} parent=5 // pred_check_branch
        %2623 = sbr.rel (%p2621) target = $region128
      $region127: #{tpu_custom_call.1} parent=5 // pred_region
        %s2624 = ssub.s32 %s32, 2
      $region128: #{tpu_custom_call.1} parent=5 // pred_fallthru
        _
    $region6: #{tpu_custom_call.1} parent=1 // loop_footer
      %s36 = sadd.s32 1, %s32
    $region7: #{tpu_custom_call.1} parent=1 // loop_footer_branch
      %31 = sbr.rel target = $region3
    $region8: #{tpu_custom_call.1} parent=1 // loop_exit
      _
    %2625 = vsyncpa [#allocation4], 1
    %s2626 = scalar_lea.sflag [#allocation4], 1
    %2627 = vsyncpa %s2626, 1
    %2628 = vsyncpa [#allocation7], 1
    %2629 = vsyncpa [#allocation10], 1
    %s2630 = scalar_lea.sflag [#allocation10], 1
    %2631 = vsyncpa %s2630, 1
    %2632 = vsyncpa [#allocation13], 1
    %s2633 = scalar_lea.sflag [#allocation13], 1
    %2634 = vsyncpa %s2633, 1
    %2635 = vsyncpa [#allocation16], 1
    %s2636 = scalar_lea.sflag [#allocation16], 1
    %2637 = vsyncpa %s2636, 1
    %2638 = vsyncpa [#allocation5], 1
    %s2639 = scalar_lea.sflag [#allocation5], 1
    %2640 = vsyncpa %s2639, 1

</llo_original>
